<compile_context>
chip_gen: v5e
topology: v5e:2x2
jax: 0.10.0
libtpu: 0.0.40
codegen_flags: <defaults>
</compile_context>

<pallas_src>
import functools

import jax
import jax.numpy as jnp
from jax.experimental import pallas as pl
from jax.experimental.pallas import tpu as pltpu

_LANE = 128     # TPU lane width; Cout is padded to a multiple of this.
_SUBLANE = 8    # sublane alignment for the pad_ref interior store.


def _round_up(x, m):
    return (x + m - 1) // m * m


def _residual_stack_kernel(x_ref, w1_ref, wu1a_ref, wu1b_ref, wu2a_ref,
                           wu2b_ref, o_ref, pad_ref, act_ref,
                           *, L, K, PAD, PAD_AL, POOL, LP):
    """Full forward pass for a block of `bt` batch elements, all in VMEM.

    x_ref  : (bt, L, Cin)             input block (NLC, real Cin, matmul dtype)
    w1_ref : (Cin, Cout_p)            1x1-conv weight, (in, out) layout
    wu*_ref: (K, Cout_p, Cout_p)      unit conv weights, wu[k][ci, co]
    o_ref  : (bt, LP, Cout_p)         pooled output block (matmul dtype)
    pad_ref: (bt, PAD_AL+L+PAD, Cout_p) zero-halo conv staging (matmul dtype);
                                      interior starts at sublane-aligned PAD_AL
    act_ref: (bt, L, Cout_p)          f32 staging for the strided max-pool
    """
    bt = x_ref.shape[0]
    cin = x_ref.shape[2]
    cp = pad_ref.shape[2]
    cdt = pad_ref.dtype

    # Zero only the halo rows the taps actually read.  Done every invocation
    # (cheap: 2*PAD rows) so it is safe under megacore grid splitting.
    if PAD > 0:
        halo = jnp.zeros((bt, PAD, cp), dtype=cdt)
        pad_ref[:, PAD_AL - PAD:PAD_AL, :] = halo
        pad_ref[:, PAD_AL + L:PAD_AL + L + PAD, :] = halo

    def matmul2d(a, w):
        # MXU matmul; operands may be bf16, accumulation is always f32.
        return jnp.dot(a, w, preferred_element_type=jnp.float32)

    def store_interior(y, relu):
        # Fused (optional ReLU) + cast + sublane-aligned store into pad_ref.
        if relu:
            y = jnp.maximum(y, 0.0)
        pad_ref[:, PAD_AL:PAD_AL + L, :] = y.astype(cdt)

    def conv_from_pad(w_ref):
        """stride-1 K-tap conv reading the current pad_ref interior, f32 out."""
        base = PAD_AL - PAD
        acc = matmul2d(pad_ref[:, base:base + L, :].reshape(bt * L, cp),
                       w_ref[0])
        for k in range(1, K):                       # static unroll over taps
            acc = acc + matmul2d(
                pad_ref[:, base + k:base + k + L, :].reshape(bt * L, cp),
                w_ref[k])
        return acc.reshape(bt, L, cp)

    # 1x1 conv == one MXU matmul over the whole batch block; the contraction
    # is over the real (narrow) Cin — cheap vs. the unit convs.
    x1 = matmul2d(x_ref[...].reshape(bt * L, cin),
                  w1_ref[...]).reshape(bt, L, cp)                 # f32, skip 1

    # residual unit 1: conv -> ReLU -> conv, + skip (adds/ReLU in f32)
    store_interior(x1, relu=False)
    a = conv_from_pad(wu1a_ref)
    store_interior(a, relu=True)          # fused ReLU + cast + store (no h slab)
    x3 = jnp.maximum(conv_from_pad(wu1b_ref) + x1, 0.0)           # f32, skip 2

    # residual unit 2
    store_interior(x3, relu=False)
    a = conv_from_pad(wu2a_ref)
    store_interior(a, relu=True)
    x5 = jnp.maximum(conv_from_pad(wu2b_ref) + x3, 0.0)           # (bt, L, cp)

    # MaxPool1d(POOL, stride=POOL): strided-slice running max -> one store.
    # TODO(synk): reuse pad_ref (matmul dtype) as the staging buffer once bf16
    # sublane-strided loads are verified to lower; frees bt*L*cp*4 B of VMEM.
    act_ref[...] = x5
    pooled = act_ref[:, pl.ds(0, LP, stride=POOL), :]
    for off in range(1, POOL):                                    # static unroll
        pooled = jnp.maximum(pooled,
                             act_ref[:, pl.ds(off, LP, stride=POOL), :])
    o_ref[...] = pooled.astype(o_ref.dtype)


def _vmem_capacity_bytes():
    """Best-effort VMEM capacity query; conservative 64 MiB (v7x) fallback."""
    try:
        info = pltpu.get_tpu_info()
        cap = getattr(info, "vmem_capacity_bytes", None)
        if cap:
            return int(cap)
    except Exception:
        pass
    return 64 * 1024 * 1024


def _pick_batch_block(n, fits_fn):
    """Largest divisor of n whose working set fits, preferring an even grid
    with >= 4 steps (>= 2 pipelined steps per v7x TensorCore), then >= 2."""
    divisors = [d for d in range(1, n + 1) if n % d == 0]
    fitting = [d for d in divisors if fits_fn(d)] or [1]
    for pred in (lambda g: g >= 4 and g % 2 == 0, lambda g: g >= 2):
        cands = [d for d in fitting if pred(n // d)]
        if cands:
            return max(cands)
    return max(fitting)


def residual_stack_forward(x_ncl, params, *, kernelsize, poolsize, stride,
                           padding, matmul_dtype=jnp.bfloat16,
                           block_batch=None):
    """x_ncl: (N, Cin, L) float32.  Returns (N, Cout, L // poolsize) float32."""
    assert stride == 1, "residual add requires length-preserving convs"
    assert 2 * padding == kernelsize - 1, "convs must preserve length"

    w_conv1, w_u1a, w_u1b, w_u2a, w_u2b = params
    n, cin, length = x_ncl.shape
    cout = w_conv1.shape[0]
    ksz = kernelsize
    lp = length // poolsize
    assert lp >= 1, "length must be at least poolsize"

    cout_p = _round_up(cout, _LANE)
    pad_al = _round_up(padding, _SUBLANE) if padding > 0 else 0
    pad_rows = pad_al + length + padding
    m_isize = jnp.dtype(matmul_dtype).itemsize

    # ---------------- layout glue (single fused pass, real Cin) -------------
    # NCL -> NLC + cast to the MXU dtype.  Cin is NOT lane-padded in HBM.
    x_nlc = jnp.transpose(x_ncl, (0, 2, 1)).astype(matmul_dtype)

    w1 = jnp.transpose(w_conv1[:, :, 0], (1, 0))                  # (Cin, Cout)
    w1 = jnp.pad(w1, ((0, 0), (0, cout_p - cout))).astype(matmul_dtype)

    def prep_unit_w(w):  # torch (Co, Ci, K) -> (K, Ci, Co), zero-padded
        wk = jnp.transpose(w, (2, 1, 0))
        wk = jnp.pad(wk, ((0, 0), (0, cout_p - cout), (0, cout_p - cout)))
        return wk.astype(matmul_dtype)

    wu1a, wu1b, wu2a, wu2b = (prep_unit_w(w) for w in
                              (w_u1a, w_u1b, w_u2a, w_u2b))

    # ------------- VMEM accounting (double-buffer + dtype aware) ------------
    def block_vmem_bytes(bt):
        inp = 2 * bt * length * cin * m_isize                 # 2x-buffered in
        out = 2 * bt * lp * cout_p * m_isize                  # 2x-buffered out
        wts = 2 * (cin * cout_p + 4 * ksz * cout_p * cout_p) * m_isize
        padb = bt * pad_rows * cout_p * m_isize               # conv staging
        actb = bt * length * cout_p * 4                       # f32 pool staging
        live = 4 * bt * length * cout_p * 4                   # x1/x3/acc headroom
        return inp + out + wts + padb + actb + live

    vmem_cap = _vmem_capacity_bytes()
    budget = min(vmem_cap * 3 // 4, 100 * 1024 * 1024)  # ~48MiB v7x, ~96MiB v5e/v6e

    bt = (_pick_batch_block(n, lambda d: block_vmem_bytes(d) <= budget)
          if block_batch is None else block_batch)
    assert n % bt == 0, "block_batch must divide the batch size"

    vmem_limit = int(min(max(budget, block_vmem_bytes(bt) + (4 << 20)),
                         vmem_cap * 9 // 10))

    kernel = functools.partial(_residual_stack_kernel, L=length, K=ksz,
                               PAD=padding, PAD_AL=pad_al, POOL=poolsize,
                               LP=lp)

    unit_w_spec = pl.BlockSpec((ksz, cout_p, cout_p), lambda b: (0, 0, 0))

    out_nlc = pl.pallas_call(
        kernel,
        out_shape=jax.ShapeDtypeStruct((n, lp, cout_p), matmul_dtype),
        grid_spec=pltpu.PrefetchScalarGridSpec(
            num_scalar_prefetch=0,
            grid=(n // bt,),
            in_specs=[
                pl.BlockSpec((bt, length, cin), lambda b: (b, 0, 0)),
                pl.BlockSpec((cin, cout_p), lambda b: (0, 0)),
                unit_w_spec, unit_w_spec, unit_w_spec, unit_w_spec,
            ],
            out_specs=pl.BlockSpec((bt, lp, cout_p), lambda b: (b, 0, 0)),
            scratch_shapes=[
                pltpu.VMEM((bt, pad_rows, cout_p), matmul_dtype),
                pltpu.VMEM((bt, length, cout_p), jnp.float32),
            ],
        ),
        compiler_params=pltpu.CompilerParams(
            dimension_semantics=("parallel",),
            vmem_limit_bytes=vmem_limit,
        ),
    )(x_nlc, w1, wu1a, wu1b, wu2a, wu2b)

    out = out_nlc[:, :, :cout].astype(jnp.float32)   # drop channel padding
    return jnp.transpose(out, (0, 2, 1))             # (N, Cout, LP)


# ----------------------------- pure-JAX reference ---------------------------
def _conv1d_ncl(x, w, pad):
    # x: (N, Ci, L), w: (Co, Ci, K), stride 1, bias-free.
    k = w.shape[2]
    xp = jnp.pad(x, ((0, 0), (0, 0), (pad, pad)))
    lout = x.shape[2] + 2 * pad - k + 1
    out = jnp.zeros((x.shape[0], w.shape[0], lout), x.dtype)
    for i in range(k):
        out = out + jnp.einsum('oi,nil->nol', w[:, :, i], xp[:, :, i:i + lout])
    return out


def residual_stack_reference(x, params, *, kernelsize, poolsize, stride,
                             padding):
    w_conv1, w_u1a, w_u1b, w_u2a, w_u2b = params
    x1 = _conv1d_ncl(x, w_conv1, 0)
    u1 = _conv1d_ncl(jnp.maximum(_conv1d_ncl(x1, w_u1a, padding), 0.0),
                     w_u1b, padding)
    x2 = u1 + x1
    x3 = jnp.maximum(x2, 0.0)
    u2 = _conv1d_ncl(jnp.maximum(_conv1d_ncl(x3, w_u2a, padding), 0.0),
                     w_u2b, padding)
    x4 = u2 + x3
    x5 = jnp.maximum(x4, 0.0)
    n, c, l = x5.shape
    lp = l // poolsize
    return jnp.max(x5[:, :, :lp * poolsize].reshape(n, c, lp, poolsize),
                   axis=-1)


# ----------------------------------- main -----------------------------------
if __name__ == "__main__":
    # Small shapes consistent with the module.  batch=4 exercises the batched
    # grid (picker prefers >= 4 grid steps, so bt=1 here, 4 steps).
    n, cin, cout, length = 4, 4, 8, 16
    kernelsize, poolsize, stride, padding = 3, 2, 1, 1

    key = jax.random.PRNGKey(0)
    kx, k1, k2, k3, k4, k5 = jax.random.split(key, 6)

    x = jax.random.normal(kx, (n, cin, length), dtype=jnp.float32)

    # Deterministic synthetic weights (shapes match the module's __init__).
    w_conv1 = 0.2 * jax.random.normal(k1, (cout, cin, 1), dtype=jnp.float32)
    w_u1a = 0.2 * jax.random.normal(k2, (cout, cout, kernelsize), jnp.float32)
    w_u1b = 0.2 * jax.random.normal(k3, (cout, cout, kernelsize), jnp.float32)
    w_u2a = 0.2 * jax.random.normal(k4, (cout, cout, kernelsize), jnp.float32)
    w_u2b = 0.2 * jax.random.normal(k5, (cout, cout, kernelsize), jnp.float32)
    params = (w_conv1, w_u1a, w_u1b, w_u2a, w_u2b)

    ref = residual_stack_reference(x, params, kernelsize=kernelsize,
                                   poolsize=poolsize, stride=stride,
                                   padding=padding)

    # Strict check: f32 matmuls must match the pure-JAX reference tightly.
    out_f32 = residual_stack_forward(x, params, kernelsize=kernelsize,
                                     poolsize=poolsize, stride=stride,
                                     padding=padding,
                                     matmul_dtype=jnp.float32)
    out_f32 = jax.block_until_ready(out_f32)
    assert out_f32.shape == (n, cout, length // poolsize), out_f32.shape
    err_f32 = float(jnp.max(jnp.abs(out_f32 - ref)))
    assert jnp.allclose(out_f32, ref, rtol=1e-4, atol=1e-4), (
        "f32 path mismatch vs reference: max abs err = %e" % err_f32)

    # Fast path: bf16 MXU operands + bf16 output store, f32 accumulation and
    # elementwise.  Slightly looser tolerance since the pooled output is now
    # also bf16-rounded before the wrapper casts back to f32.
    out_bf16 = residual_stack_forward(x, params, kernelsize=kernelsize,
                                      poolsize=poolsize, stride=stride,
                                      padding=padding,
                                      matmul_dtype=jnp.bfloat16)
    out_bf16 = jax.block_until_ready(out_bf16)
    assert out_bf16.shape == (n, cout, length // poolsize), out_bf16.shape
    err_bf16 = float(jnp.max(jnp.abs(out_bf16 - ref)))
    assert jnp.allclose(out_bf16, ref, rtol=8e-2, atol=8e-2), (
        "bf16 path mismatch vs reference: max abs err = %e" % err_bf16)

    print("KERNEL_OK")
</pallas_src>

<mosaic_0001>
module attributes {stable_mosaic.version = 11 : i64} {
  func.func @_residual_stack_kernel(%arg0: i32, %arg1: memref<1x16x4xf32, #tpu.memory_space<vmem>>, %arg2: memref<4x128xf32, #tpu.memory_space<vmem>>, %arg3: memref<3x128x128xf32, #tpu.memory_space<vmem>>, %arg4: memref<3x128x128xf32, #tpu.memory_space<vmem>>, %arg5: memref<3x128x128xf32, #tpu.memory_space<vmem>>, %arg6: memref<3x128x128xf32, #tpu.memory_space<vmem>>, %arg7: memref<1x8x128xf32, #tpu.memory_space<vmem>>, %arg8: memref<1x25x128xf32, #tpu.memory_space<vmem>>, %arg9: memref<1x16x128xf32, #tpu.memory_space<vmem>>) attributes {dimension_semantics = [#tpu.dimension_semantics<parallel>], iteration_bounds = array<i64: 4>, scalar_prefetch = 0 : i64, scratch_operands = 2 : i64, tpu.core_type = #tpu.core_type<tc>, window_params = [{transform_indices = @transform_0, window_bounds = array<i64: 1, 16, 4>}, {pipeline_mode = #tpu.pipeline_mode<synchronous>, transform_indices = @transform_1, window_bounds = array<i64: 4, 128>}, {pipeline_mode = #tpu.pipeline_mode<synchronous>, transform_indices = @transform_2, window_bounds = array<i64: 3, 128, 128>}, {pipeline_mode = #tpu.pipeline_mode<synchronous>, transform_indices = @transform_3, window_bounds = array<i64: 3, 128, 128>}, {pipeline_mode = #tpu.pipeline_mode<synchronous>, transform_indices = @transform_4, window_bounds = array<i64: 3, 128, 128>}, {pipeline_mode = #tpu.pipeline_mode<synchronous>, transform_indices = @transform_5, window_bounds = array<i64: 3, 128, 128>}, {transform_indices = @transform_6, window_bounds = array<i64: 1, 8, 128>}]} {
    %cst = arith.constant 0.000000e+00 : f32
    %0 = vector.broadcast %cst : f32 to vector<1x1x128xf32>
    %c0 = arith.constant 0 : index
    %c7 = arith.constant 7 : index
    %c0_0 = arith.constant 0 : index
    %1 = vector.load %arg8[%c0, %c7, %c0_0] : memref<1x25x128xf32, #tpu.memory_space<vmem>>, vector<1x1x128xf32>
    tpu.vector_store %arg8[%c0, %c7, %c0_0], %0 {strides = array<i32>} : memref<1x25x128xf32, #tpu.memory_space<vmem>>, vector<1x1x128xf32>,
    %c0_1 = arith.constant 0 : index
    %c24 = arith.constant 24 : index
    %c0_2 = arith.constant 0 : index
    %2 = vector.load %arg8[%c0_1, %c24, %c0_2] : memref<1x25x128xf32, #tpu.memory_space<vmem>>, vector<1x1x128xf32>
    tpu.vector_store %arg8[%c0_1, %c24, %c0_2], %0 {strides = array<i32>} : memref<1x25x128xf32, #tpu.memory_space<vmem>>, vector<1x1x128xf32>,
    %c0_3 = arith.constant 0 : index
    %c0_4 = arith.constant 0 : index
    %c0_5 = arith.constant 0 : index
    %3 = vector.load %arg1[%c0_3, %c0_4, %c0_5] : memref<1x16x4xf32, #tpu.memory_space<vmem>>, vector<1x16x4xf32>
    %4 = vector.shape_cast %3 : vector<1x16x4xf32> to vector<16x4xf32>
    %c0_6 = arith.constant 0 : index
    %c0_7 = arith.constant 0 : index
    %5 = vector.load %arg2[%c0_6, %c0_7] : memref<4x128xf32, #tpu.memory_space<vmem>>, vector<4x128xf32>
    %cst_8 = arith.constant dense<0.000000e+00> : vector<16x128xf32>
    %6 = tpu.matmul %4, %5, %cst_8 {dimension_numbers = #tpu.dot_dimension_numbers<[1], [0], [0], [1], [0, 0, 1, 1], [], []>} : vector<16x4xf32>, vector<4x128xf32>, vector<16x128xf32> -> vector<16x128xf32>
    %7 = vector.shape_cast %6 : vector<16x128xf32> to vector<1x16x128xf32>
    %c0_9 = arith.constant 0 : index
    %c8 = arith.constant 8 : index
    %c0_10 = arith.constant 0 : index
    %8 = vector.load %arg8[%c0_9, %c8, %c0_10] : memref<1x25x128xf32, #tpu.memory_space<vmem>>, vector<1x16x128xf32>
    tpu.vector_store %arg8[%c0_9, %c8, %c0_10], %7 {strides = array<i32>} : memref<1x25x128xf32, #tpu.memory_space<vmem>>, vector<1x16x128xf32>,
    %c0_11 = arith.constant 0 : index
    %c7_12 = arith.constant 7 : index
    %c0_13 = arith.constant 0 : index
    %9 = vector.load %arg8[%c0_11, %c7_12, %c0_13] : memref<1x25x128xf32, #tpu.memory_space<vmem>>, vector<1x16x128xf32>
    %10 = vector.shape_cast %9 : vector<1x16x128xf32> to vector<16x128xf32>
    %c0_14 = arith.constant 0 : index
    %c0_15 = arith.constant 0 : index
    %c0_16 = arith.constant 0 : index
    %11 = vector.load %arg3[%c0_14, %c0_15, %c0_16] : memref<3x128x128xf32, #tpu.memory_space<vmem>>, vector<1x128x128xf32>
    %12 = vector.shape_cast %11 : vector<1x128x128xf32> to vector<128x128xf32>
    %cst_17 = arith.constant dense<0.000000e+00> : vector<16x128xf32>
    %13 = tpu.matmul %10, %12, %cst_17 {dimension_numbers = #tpu.dot_dimension_numbers<[1], [0], [0], [1], [0, 0, 1, 1], [], []>} : vector<16x128xf32>, vector<128x128xf32>, vector<16x128xf32> -> vector<16x128xf32>
    %c0_18 = arith.constant 0 : index
    %c8_19 = arith.constant 8 : index
    %c0_20 = arith.constant 0 : index
    %14 = vector.load %arg8[%c0_18, %c8_19, %c0_20] : memref<1x25x128xf32, #tpu.memory_space<vmem>>, vector<1x16x128xf32>
    %15 = vector.shape_cast %14 : vector<1x16x128xf32> to vector<16x128xf32>
    %c1 = arith.constant 1 : index
    %c0_21 = arith.constant 0 : index
    %c0_22 = arith.constant 0 : index
    %16 = vector.load %arg3[%c1, %c0_21, %c0_22] : memref<3x128x128xf32, #tpu.memory_space<vmem>>, vector<1x128x128xf32>
    %17 = vector.shape_cast %16 : vector<1x128x128xf32> to vector<128x128xf32>
    %cst_23 = arith.constant dense<0.000000e+00> : vector<16x128xf32>
    %18 = tpu.matmul %15, %17, %cst_23 {dimension_numbers = #tpu.dot_dimension_numbers<[1], [0], [0], [1], [0, 0, 1, 1], [], []>} : vector<16x128xf32>, vector<128x128xf32>, vector<16x128xf32> -> vector<16x128xf32>
    %19 = arith.addf %13, %18 : vector<16x128xf32>
    %c0_24 = arith.constant 0 : index
    %c9 = arith.constant 9 : index
    %c0_25 = arith.constant 0 : index
    %20 = vector.load %arg8[%c0_24, %c9, %c0_25] : memref<1x25x128xf32, #tpu.memory_space<vmem>>, vector<1x16x128xf32>
    %21 = vector.shape_cast %20 : vector<1x16x128xf32> to vector<16x128xf32>
    %c2 = arith.constant 2 : index
    %c0_26 = arith.constant 0 : index
    %c0_27 = arith.constant 0 : index
    %22 = vector.load %arg3[%c2, %c0_26, %c0_27] : memref<3x128x128xf32, #tpu.memory_space<vmem>>, vector<1x128x128xf32>
    %23 = vector.shape_cast %22 : vector<1x128x128xf32> to vector<128x128xf32>
    %cst_28 = arith.constant dense<0.000000e+00> : vector<16x128xf32>
    %24 = tpu.matmul %21, %23, %cst_28 {dimension_numbers = #tpu.dot_dimension_numbers<[1], [0], [0], [1], [0, 0, 1, 1], [], []>} : vector<16x128xf32>, vector<128x128xf32>, vector<16x128xf32> -> vector<16x128xf32>
    %25 = arith.addf %19, %24 : vector<16x128xf32>
    %26 = vector.shape_cast %25 : vector<16x128xf32> to vector<1x16x128xf32>
    %cst_29 = arith.constant 0.000000e+00 : f32
    %27 = vector.broadcast %cst_29 : f32 to vector<1x16x128xf32>
    %28 = arith.maximumf %26, %27 : vector<1x16x128xf32>
    %c0_30 = arith.constant 0 : index
    %c8_31 = arith.constant 8 : index
    %c0_32 = arith.constant 0 : index
    %29 = vector.load %arg8[%c0_30, %c8_31, %c0_32] : memref<1x25x128xf32, #tpu.memory_space<vmem>>, vector<1x16x128xf32>
    tpu.vector_store %arg8[%c0_30, %c8_31, %c0_32], %28 {strides = array<i32>} : memref<1x25x128xf32, #tpu.memory_space<vmem>>, vector<1x16x128xf32>,
    %c0_33 = arith.constant 0 : index
    %c7_34 = arith.constant 7 : index
    %c0_35 = arith.constant 0 : index
    %30 = vector.load %arg8[%c0_33, %c7_34, %c0_35] : memref<1x25x128xf32, #tpu.memory_space<vmem>>, vector<1x16x128xf32>
    %31 = vector.shape_cast %30 : vector<1x16x128xf32> to vector<16x128xf32>
    %c0_36 = arith.constant 0 : index
    %c0_37 = arith.constant 0 : index
    %c0_38 = arith.constant 0 : index
    %32 = vector.load %arg4[%c0_36, %c0_37, %c0_38] : memref<3x128x128xf32, #tpu.memory_space<vmem>>, vector<1x128x128xf32>
    %33 = vector.shape_cast %32 : vector<1x128x128xf32> to vector<128x128xf32>
    %cst_39 = arith.constant dense<0.000000e+00> : vector<16x128xf32>
    %34 = tpu.matmul %31, %33, %cst_39 {dimension_numbers = #tpu.dot_dimension_numbers<[1], [0], [0], [1], [0, 0, 1, 1], [], []>} : vector<16x128xf32>, vector<128x128xf32>, vector<16x128xf32> -> vector<16x128xf32>
    %c0_40 = arith.constant 0 : index
    %c8_41 = arith.constant 8 : index
    %c0_42 = arith.constant 0 : index
    %35 = vector.load %arg8[%c0_40, %c8_41, %c0_42] : memref<1x25x128xf32, #tpu.memory_space<vmem>>, vector<1x16x128xf32>
    %36 = vector.shape_cast %35 : vector<1x16x128xf32> to vector<16x128xf32>
    %c1_43 = arith.constant 1 : index
    %c0_44 = arith.constant 0 : index
    %c0_45 = arith.constant 0 : index
    %37 = vector.load %arg4[%c1_43, %c0_44, %c0_45] : memref<3x128x128xf32, #tpu.memory_space<vmem>>, vector<1x128x128xf32>
    %38 = vector.shape_cast %37 : vector<1x128x128xf32> to vector<128x128xf32>
    %cst_46 = arith.constant dense<0.000000e+00> : vector<16x128xf32>
    %39 = tpu.matmul %36, %38, %cst_46 {dimension_numbers = #tpu.dot_dimension_numbers<[1], [0], [0], [1], [0, 0, 1, 1], [], []>} : vector<16x128xf32>, vector<128x128xf32>, vector<16x128xf32> -> vector<16x128xf32>
    %40 = arith.addf %34, %39 : vector<16x128xf32>
    %c0_47 = arith.constant 0 : index
    %c9_48 = arith.constant 9 : index
    %c0_49 = arith.constant 0 : index
    %41 = vector.load %arg8[%c0_47, %c9_48, %c0_49] : memref<1x25x128xf32, #tpu.memory_space<vmem>>, vector<1x16x128xf32>
    %42 = vector.shape_cast %41 : vector<1x16x128xf32> to vector<16x128xf32>
    %c2_50 = arith.constant 2 : index
    %c0_51 = arith.constant 0 : index
    %c0_52 = arith.constant 0 : index
    %43 = vector.load %arg4[%c2_50, %c0_51, %c0_52] : memref<3x128x128xf32, #tpu.memory_space<vmem>>, vector<1x128x128xf32>
    %44 = vector.shape_cast %43 : vector<1x128x128xf32> to vector<128x128xf32>
    %cst_53 = arith.constant dense<0.000000e+00> : vector<16x128xf32>
    %45 = tpu.matmul %42, %44, %cst_53 {dimension_numbers = #tpu.dot_dimension_numbers<[1], [0], [0], [1], [0, 0, 1, 1], [], []>} : vector<16x128xf32>, vector<128x128xf32>, vector<16x128xf32> -> vector<16x128xf32>
    %46 = arith.addf %40, %45 : vector<16x128xf32>
    %47 = vector.shape_cast %46 : vector<16x128xf32> to vector<1x16x128xf32>
    %48 = arith.addf %47, %7 : vector<1x16x128xf32>
    %cst_54 = arith.constant 0.000000e+00 : f32
    %49 = vector.broadcast %cst_54 : f32 to vector<1x16x128xf32>
    %50 = arith.maximumf %48, %49 : vector<1x16x128xf32>
    %c0_55 = arith.constant 0 : index
    %c8_56 = arith.constant 8 : index
    %c0_57 = arith.constant 0 : index
    %51 = vector.load %arg8[%c0_55, %c8_56, %c0_57] : memref<1x25x128xf32, #tpu.memory_space<vmem>>, vector<1x16x128xf32>
    tpu.vector_store %arg8[%c0_55, %c8_56, %c0_57], %50 {strides = array<i32>} : memref<1x25x128xf32, #tpu.memory_space<vmem>>, vector<1x16x128xf32>,
    %c0_58 = arith.constant 0 : index
    %c7_59 = arith.constant 7 : index
    %c0_60 = arith.constant 0 : index
    %52 = vector.load %arg8[%c0_58, %c7_59, %c0_60] : memref<1x25x128xf32, #tpu.memory_space<vmem>>, vector<1x16x128xf32>
    %53 = vector.shape_cast %52 : vector<1x16x128xf32> to vector<16x128xf32>
    %c0_61 = arith.constant 0 : index
    %c0_62 = arith.constant 0 : index
    %c0_63 = arith.constant 0 : index
    %54 = vector.load %arg5[%c0_61, %c0_62, %c0_63] : memref<3x128x128xf32, #tpu.memory_space<vmem>>, vector<1x128x128xf32>
    %55 = vector.shape_cast %54 : vector<1x128x128xf32> to vector<128x128xf32>
    %cst_64 = arith.constant dense<0.000000e+00> : vector<16x128xf32>
    %56 = tpu.matmul %53, %55, %cst_64 {dimension_numbers = #tpu.dot_dimension_numbers<[1], [0], [0], [1], [0, 0, 1, 1], [], []>} : vector<16x128xf32>, vector<128x128xf32>, vector<16x128xf32> -> vector<16x128xf32>
    %c0_65 = arith.constant 0 : index
    %c8_66 = arith.constant 8 : index
    %c0_67 = arith.constant 0 : index
    %57 = vector.load %arg8[%c0_65, %c8_66, %c0_67] : memref<1x25x128xf32, #tpu.memory_space<vmem>>, vector<1x16x128xf32>
    %58 = vector.shape_cast %57 : vector<1x16x128xf32> to vector<16x128xf32>
    %c1_68 = arith.constant 1 : index
    %c0_69 = arith.constant 0 : index
    %c0_70 = arith.constant 0 : index
    %59 = vector.load %arg5[%c1_68, %c0_69, %c0_70] : memref<3x128x128xf32, #tpu.memory_space<vmem>>, vector<1x128x128xf32>
    %60 = vector.shape_cast %59 : vector<1x128x128xf32> to vector<128x128xf32>
    %cst_71 = arith.constant dense<0.000000e+00> : vector<16x128xf32>
    %61 = tpu.matmul %58, %60, %cst_71 {dimension_numbers = #tpu.dot_dimension_numbers<[1], [0], [0], [1], [0, 0, 1, 1], [], []>} : vector<16x128xf32>, vector<128x128xf32>, vector<16x128xf32> -> vector<16x128xf32>
    %62 = arith.addf %56, %61 : vector<16x128xf32>
    %c0_72 = arith.constant 0 : index
    %c9_73 = arith.constant 9 : index
    %c0_74 = arith.constant 0 : index
    %63 = vector.load %arg8[%c0_72, %c9_73, %c0_74] : memref<1x25x128xf32, #tpu.memory_space<vmem>>, vector<1x16x128xf32>
    %64 = vector.shape_cast %63 : vector<1x16x128xf32> to vector<16x128xf32>
    %c2_75 = arith.constant 2 : index
    %c0_76 = arith.constant 0 : index
    %c0_77 = arith.constant 0 : index
    %65 = vector.load %arg5[%c2_75, %c0_76, %c0_77] : memref<3x128x128xf32, #tpu.memory_space<vmem>>, vector<1x128x128xf32>
    %66 = vector.shape_cast %65 : vector<1x128x128xf32> to vector<128x128xf32>
    %cst_78 = arith.constant dense<0.000000e+00> : vector<16x128xf32>
    %67 = tpu.matmul %64, %66, %cst_78 {dimension_numbers = #tpu.dot_dimension_numbers<[1], [0], [0], [1], [0, 0, 1, 1], [], []>} : vector<16x128xf32>, vector<128x128xf32>, vector<16x128xf32> -> vector<16x128xf32>
    %68 = arith.addf %62, %67 : vector<16x128xf32>
    %69 = vector.shape_cast %68 : vector<16x128xf32> to vector<1x16x128xf32>
    %cst_79 = arith.constant 0.000000e+00 : f32
    %70 = vector.broadcast %cst_79 : f32 to vector<1x16x128xf32>
    %71 = arith.maximumf %69, %70 : vector<1x16x128xf32>
    %c0_80 = arith.constant 0 : index
    %c8_81 = arith.constant 8 : index
    %c0_82 = arith.constant 0 : index
    %72 = vector.load %arg8[%c0_80, %c8_81, %c0_82] : memref<1x25x128xf32, #tpu.memory_space<vmem>>, vector<1x16x128xf32>
    tpu.vector_store %arg8[%c0_80, %c8_81, %c0_82], %71 {strides = array<i32>} : memref<1x25x128xf32, #tpu.memory_space<vmem>>, vector<1x16x128xf32>,
    %c0_83 = arith.constant 0 : index
    %c7_84 = arith.constant 7 : index
    %c0_85 = arith.constant 0 : index
    %73 = vector.load %arg8[%c0_83, %c7_84, %c0_85] : memref<1x25x128xf32, #tpu.memory_space<vmem>>, vector<1x16x128xf32>
    %74 = vector.shape_cast %73 : vector<1x16x128xf32> to vector<16x128xf32>
    %c0_86 = arith.constant 0 : index
    %c0_87 = arith.constant 0 : index
    %c0_88 = arith.constant 0 : index
    %75 = vector.load %arg6[%c0_86, %c0_87, %c0_88] : memref<3x128x128xf32, #tpu.memory_space<vmem>>, vector<1x128x128xf32>
    %76 = vector.shape_cast %75 : vector<1x128x128xf32> to vector<128x128xf32>
    %cst_89 = arith.constant dense<0.000000e+00> : vector<16x128xf32>
    %77 = tpu.matmul %74, %76, %cst_89 {dimension_numbers = #tpu.dot_dimension_numbers<[1], [0], [0], [1], [0, 0, 1, 1], [], []>} : vector<16x128xf32>, vector<128x128xf32>, vector<16x128xf32> -> vector<16x128xf32>
    %c0_90 = arith.constant 0 : index
    %c8_91 = arith.constant 8 : index
    %c0_92 = arith.constant 0 : index
    %78 = vector.load %arg8[%c0_90, %c8_91, %c0_92] : memref<1x25x128xf32, #tpu.memory_space<vmem>>, vector<1x16x128xf32>
    %79 = vector.shape_cast %78 : vector<1x16x128xf32> to vector<16x128xf32>
    %c1_93 = arith.constant 1 : index
    %c0_94 = arith.constant 0 : index
    %c0_95 = arith.constant 0 : index
    %80 = vector.load %arg6[%c1_93, %c0_94, %c0_95] : memref<3x128x128xf32, #tpu.memory_space<vmem>>, vector<1x128x128xf32>
    %81 = vector.shape_cast %80 : vector<1x128x128xf32> to vector<128x128xf32>
    %cst_96 = arith.constant dense<0.000000e+00> : vector<16x128xf32>
    %82 = tpu.matmul %79, %81, %cst_96 {dimension_numbers = #tpu.dot_dimension_numbers<[1], [0], [0], [1], [0, 0, 1, 1], [], []>} : vector<16x128xf32>, vector<128x128xf32>, vector<16x128xf32> -> vector<16x128xf32>
    %83 = arith.addf %77, %82 : vector<16x128xf32>
    %c0_97 = arith.constant 0 : index
    %c9_98 = arith.constant 9 : index
    %c0_99 = arith.constant 0 : index
    %84 = vector.load %arg8[%c0_97, %c9_98, %c0_99] : memref<1x25x128xf32, #tpu.memory_space<vmem>>, vector<1x16x128xf32>
    %85 = vector.shape_cast %84 : vector<1x16x128xf32> to vector<16x128xf32>
    %c2_100 = arith.constant 2 : index
    %c0_101 = arith.constant 0 : index
    %c0_102 = arith.constant 0 : index
    %86 = vector.load %arg6[%c2_100, %c0_101, %c0_102] : memref<3x128x128xf32, #tpu.memory_space<vmem>>, vector<1x128x128xf32>
    %87 = vector.shape_cast %86 : vector<1x128x128xf32> to vector<128x128xf32>
    %cst_103 = arith.constant dense<0.000000e+00> : vector<16x128xf32>
    %88 = tpu.matmul %85, %87, %cst_103 {dimension_numbers = #tpu.dot_dimension_numbers<[1], [0], [0], [1], [0, 0, 1, 1], [], []>} : vector<16x128xf32>, vector<128x128xf32>, vector<16x128xf32> -> vector<16x128xf32>
    %89 = arith.addf %83, %88 : vector<16x128xf32>
    %90 = vector.shape_cast %89 : vector<16x128xf32> to vector<1x16x128xf32>
    %91 = arith.addf %90, %50 : vector<1x16x128xf32>
    %cst_104 = arith.constant 0.000000e+00 : f32
    %92 = vector.broadcast %cst_104 : f32 to vector<1x16x128xf32>
    %93 = arith.maximumf %91, %92 : vector<1x16x128xf32>
    %c0_105 = arith.constant 0 : index
    %c0_106 = arith.constant 0 : index
    %c0_107 = arith.constant 0 : index
    %94 = vector.load %arg9[%c0_105, %c0_106, %c0_107] : memref<1x16x128xf32, #tpu.memory_space<vmem>>, vector<1x16x128xf32>
    tpu.vector_store %arg9[%c0_105, %c0_106, %c0_107], %93 {strides = array<i32>} : memref<1x16x128xf32, #tpu.memory_space<vmem>>, vector<1x16x128xf32>,
    %c0_108 = arith.constant 0 : index
    %c0_109 = arith.constant 0 : index
    %c0_110 = arith.constant 0 : index
    %95 = tpu.strided_load %arg9[%c0_108, %c0_109, %c0_110] {strides = array<i32: 1, 2, 1>} : memref<1x16x128xf32, #tpu.memory_space<vmem>>, vector<1x8x128xf32>
    %c0_111 = arith.constant 0 : index
    %c1_112 = arith.constant 1 : index
    %c0_113 = arith.constant 0 : index
    %96 = tpu.strided_load %arg9[%c0_111, %c1_112, %c0_113] {strides = array<i32: 1, 2, 1>} : memref<1x16x128xf32, #tpu.memory_space<vmem>>, vector<1x8x128xf32>
    %97 = arith.maximumf %95, %96 : vector<1x8x128xf32>
    %c0_114 = arith.constant 0 : index
    %c0_115 = arith.constant 0 : index
    %c0_116 = arith.constant 0 : index
    %98 = vector.load %arg7[%c0_114, %c0_115, %c0_116] : memref<1x8x128xf32, #tpu.memory_space<vmem>>, vector<1x8x128xf32>
    tpu.vector_store %arg7[%c0_114, %c0_115, %c0_116], %97 {strides = array<i32>} : memref<1x8x128xf32, #tpu.memory_space<vmem>>, vector<1x8x128xf32>,
    return
  }
  func.func @transform_0(%arg0: i32) -> (i32, i32, i32) {
    %c0_i32 = arith.constant 0 : i32
    %c0_i32_0 = arith.constant 0 : i32
    %c0_i32_1 = arith.constant 0 : i32
    return %arg0, %c0_i32, %c0_i32_0 : i32, i32, i32
  }
  func.func @transform_1(%arg0: i32) -> (i32, i32) {
    %c0_i32 = arith.constant 0 : i32
    %c0_i32_0 = arith.constant 0 : i32
    %c0_i32_1 = arith.constant 0 : i32
    return %c0_i32, %c0_i32_0 : i32, i32
  }
  func.func @transform_2(%arg0: i32) -> (i32, i32, i32) {
    %c0_i32 = arith.constant 0 : i32
    %c0_i32_0 = arith.constant 0 : i32
    %c0_i32_1 = arith.constant 0 : i32
    %c0_i32_2 = arith.constant 0 : i32
    return %c0_i32, %c0_i32_0, %c0_i32_1 : i32, i32, i32
  }
  func.func @transform_3(%arg0: i32) -> (i32, i32, i32) {
    %c0_i32 = arith.constant 0 : i32
    %c0_i32_0 = arith.constant 0 : i32
    %c0_i32_1 = arith.constant 0 : i32
    %c0_i32_2 = arith.constant 0 : i32
    return %c0_i32, %c0_i32_0, %c0_i32_1 : i32, i32, i32
  }
  func.func @transform_4(%arg0: i32) -> (i32, i32, i32) {
    %c0_i32 = arith.constant 0 : i32
    %c0_i32_0 = arith.constant 0 : i32
    %c0_i32_1 = arith.constant 0 : i32
    %c0_i32_2 = arith.constant 0 : i32
    return %c0_i32, %c0_i32_0, %c0_i32_1 : i32, i32, i32
  }
  func.func @transform_5(%arg0: i32) -> (i32, i32, i32) {
    %c0_i32 = arith.constant 0 : i32
    %c0_i32_0 = arith.constant 0 : i32
    %c0_i32_1 = arith.constant 0 : i32
    %c0_i32_2 = arith.constant 0 : i32
    return %c0_i32, %c0_i32_0, %c0_i32_1 : i32, i32, i32
  }
  func.func @transform_6(%arg0: i32) -> (i32, i32, i32) {
    %c0_i32 = arith.constant 0 : i32
    %c0_i32_0 = arith.constant 0 : i32
    %c0_i32_1 = arith.constant 0 : i32
    return %arg0, %c0_i32, %c0_i32_0 : i32, i32, i32
  }
}

</mosaic_0001>

<llo_original>
// kernel: tpu_custom_call.1
$region0: #{tpu_custom_call.1}
  #allocation0 [shape = 'u32[]', space=smem, size = 0x4, offset = 0x4, fixed_abs, tag = 'smem constant byte address 0x4 - core index']
  #allocation1 [shape = 'u32[72,128]{1,0:T(1,128)}', space=vmem, size = 0x9000, scoped, tag = 'internal scratch']
  #allocation2 [shape = 'f32[1,25,128]{2,1,0:T(8,128)}', space=vmem, size = 0x4000, scoped, tag = 'scratch operand']
  #allocation3 [shape = 'f32[1,16,128]{2,1,0:T(8,128)}', space=vmem, size = 0x2000, scoped, tag = 'scratch operand']
  %s0 = inlined_call_operand.vmem [shape: f32[4,16,4], index: 0, kind: input, shape index: {}]
  %s1 = inlined_call_operand.vmem [shape: f32[4,128], index: 1, kind: input, shape index: {}]
  %s2 = inlined_call_operand.hbm [shape: f32[3,128,128], index: 2, kind: input, shape index: {}]
  %s3 = inlined_call_operand.hbm [shape: f32[3,128,128], index: 3, kind: input, shape index: {}]
  %s4 = inlined_call_operand.hbm [shape: f32[3,128,128], index: 4, kind: input, shape index: {}]
  %s5 = inlined_call_operand.hbm [shape: f32[3,128,128], index: 5, kind: input, shape index: {}]
  %s6 = inlined_call_operand.hbm [shape: f32[4,8,128], index: 6, kind: output, shape index: {}]
  %s7 = sld [smem:[#allocation0]]
  $region73: #{tpu_custom_call.1} parent=0
    _
  %s9 = ssub.s32 1, %s7
  %s10 = scalar_select 0, %s9, %s7
  $region1: #{tpu_custom_call.1} parent=0
    #allocation4 [shape = 'u8[196608]{0}', space=vmem, size = 0x30000, scoped, tag = 'input window, operand 2, single buffered']
    #allocation5 [shape = 's32[2]{0}', space=sflag, size = 0x8, scoped, tag = 'scoped memory for tpu_custom_call.1']
    #allocation6 [shape = 's32[2]{0}', space=sflag, size = 0x8, scoped, tag = 'scoped memory for tpu_custom_call.1']
    #allocation7 [shape = 'u8[196608]{0}', space=vmem, size = 0x30000, scoped, tag = 'input window, operand 3, single buffered']
    #allocation8 [shape = 's32[1]{0}', space=sflag, size = 0x4, scoped, tag = 'scoped memory for tpu_custom_call.1']
    #allocation9 [shape = 'u8[196608]{0}', space=vmem, size = 0x30000, scoped, tag = 'input window, operand 4, single buffered']
    #allocation10 [shape = 'u8[196608]{0}', space=vmem, size = 0x30000, scoped, tag = 'input window, operand 5, single buffered']
    #allocation11 [shape = 's32[1]{0}', space=sflag, size = 0x4, scoped, tag = 'scoped memory for tpu_custom_call.1']
    #allocation12 [shape = 'u8[8192]{0}', space=vmem, size = 0x2000, scoped, tag = 'output window, operand 0']
    %11 = vsyncpa [#allocation5], 0
    %12 = vsyncpa [#allocation8], 0
    %13 = vsyncpa [#allocation11], 0
    %14 = vsyncpa [#allocation6], 0
    %s15 = scalar_lea.sflag [#allocation6], 1
    %16 = vsyncpa %s15, 0
    loop: start=0, step=1, limit=6
    $region2: #{tpu_custom_call.1} parent=1 // loop_pre_header
      _
    $region3: #{tpu_custom_call.1} parent=1 // loop_header
      %s18 = sphi 0, %s22
      %p19 = scmp.ge.s32.totalorder %s18, 6
      %s28 = sphi 0, %s30
      %s31 = sphi 0, %s28
      %s32 = sphi 0, %s31
      %s48 = sphi 0, %s32
      %s52 = sphi 0, %s52
      %s54 = sphi 0, %s52
      %s55 = sphi 0, %s54
      %s69 = sphi 0, %s55
      %s73 = sphi 0, %s73
      %s75 = sphi 0, %s73
      %s76 = sphi 0, %s75
      %s90 = sphi 0, %s76
      %s94 = sphi 0, %s94
      %s96 = sphi 0, %s94
      %s97 = sphi 0, %s96
      %s111 = sphi 0, %s97
      %s115 = sphi 0, %s115
      %s117 = sphi 0, %s115
      %s118 = sphi 0, %s117
      %s132 = sphi 0, %s118
      %s136 = sphi 0, %s136
      %s138 = sphi 0, %s136
      %s139 = sphi 0, %s138
      %s153 = sphi 0, %s139
      %s159 = sphi 0, %s161
      %s162 = sphi 0, %s159
      %s163 = sphi 0, %s162
      %s179 = sphi 0, %s163
    $region4: #{tpu_custom_call.1} parent=1 // loop_header_branch
      %21 = sbr.rel (%p19) target = $region8
    $region5: #{tpu_custom_call.1} parent=1 // loop_body
      %s23 = ssub.s32 %s18, 1
      %s24 = ssub.s32 %s18, 2
      %s25 = sadd.s32 %s18, 1
      %s26 = ssub.s32 %s18, %s25
      %p27 = scmp.eq.s32.totalorder %s26, 0
      %s29 = sadd.s32 %s28, 1
      %s30 = scalar_select %p27, %s28, %s29
      %p33 = pneg %p27
      %p34 = scmp.eq.s32.totalorder %s18, 3
      %p35 = por %p33, %p34
      %p36 = scmp.ne.s32.totalorder %s28, %s31
      %p37 = scmp.eq.s32.totalorder %s18, 0
      %p38 = por %p36, %p37
      %p39 = scmp.ne.s32.totalorder %s28, %s31
      %p40 = scmp.eq.s32.totalorder %s23, 3
      %p41 = por %p39, %p40
      %p42 = scmp.ne.s32.totalorder %s31, %s32
      %p43 = scmp.eq.s32.totalorder %s23, 0
      %p44 = por %p42, %p43
      %p45 = scmp.ne.s32.totalorder %s31, %s32
      %p46 = scmp.eq.s32.totalorder %s24, 3
      %p47 = por %p45, %p46
      %p49 = scmp.ne.s32.totalorder %s32, %s48
      %p50 = scmp.eq.s32.totalorder %s24, 0
      %p51 = por %p49, %p50
      %s53 = sadd.s32 %s52, 1
      %p56 = scmp.eq.s32.totalorder %s18, 3
      %p57 = scmp.ne.s32.totalorder %s52, %s54
      %p58 = scmp.eq.s32.totalorder %s18, 0
      %p59 = por %p57, %p58
      %p60 = scmp.ne.s32.totalorder %s52, %s54
      %p61 = scmp.eq.s32.totalorder %s23, 3
      %p62 = por %p60, %p61
      %p63 = scmp.ne.s32.totalorder %s54, %s55
      %p64 = scmp.eq.s32.totalorder %s23, 0
      %p65 = por %p63, %p64
      %p66 = scmp.ne.s32.totalorder %s54, %s55
      %p67 = scmp.eq.s32.totalorder %s24, 3
      %p68 = por %p66, %p67
      %p70 = scmp.ne.s32.totalorder %s55, %s69
      %p71 = scmp.eq.s32.totalorder %s24, 0
      %p72 = por %p70, %p71
      %s74 = sadd.s32 %s73, 1
      %p77 = scmp.eq.s32.totalorder %s18, 3
      %p78 = scmp.ne.s32.totalorder %s73, %s75
      %p79 = scmp.eq.s32.totalorder %s18, 0
      %p80 = por %p78, %p79
      %p81 = scmp.ne.s32.totalorder %s73, %s75
      %p82 = scmp.eq.s32.totalorder %s23, 3
      %p83 = por %p81, %p82
      %p84 = scmp.ne.s32.totalorder %s75, %s76
      %p85 = scmp.eq.s32.totalorder %s23, 0
      %p86 = por %p84, %p85
      %p87 = scmp.ne.s32.totalorder %s75, %s76
      %p88 = scmp.eq.s32.totalorder %s24, 3
      %p89 = por %p87, %p88
      %p91 = scmp.ne.s32.totalorder %s76, %s90
      %p92 = scmp.eq.s32.totalorder %s24, 0
      %p93 = por %p91, %p92
      %s95 = sadd.s32 %s94, 1
      %p98 = scmp.eq.s32.totalorder %s18, 3
      %p99 = scmp.ne.s32.totalorder %s94, %s96
      %p100 = scmp.eq.s32.totalorder %s18, 0
      %p101 = por %p99, %p100
      %p102 = scmp.ne.s32.totalorder %s94, %s96
      %p103 = scmp.eq.s32.totalorder %s23, 3
      %p104 = por %p102, %p103
      %p105 = scmp.ne.s32.totalorder %s96, %s97
      %p106 = scmp.eq.s32.totalorder %s23, 0
      %p107 = por %p105, %p106
      %p108 = scmp.ne.s32.totalorder %s96, %s97
      %p109 = scmp.eq.s32.totalorder %s24, 3
      %p110 = por %p108, %p109
      %p112 = scmp.ne.s32.totalorder %s97, %s111
      %p113 = scmp.eq.s32.totalorder %s24, 0
      %p114 = por %p112, %p113
      %s116 = sadd.s32 %s115, 1
      %p119 = scmp.eq.s32.totalorder %s18, 3
      %p120 = scmp.ne.s32.totalorder %s115, %s117
      %p121 = scmp.eq.s32.totalorder %s18, 0
      %p122 = por %p120, %p121
      %p123 = scmp.ne.s32.totalorder %s115, %s117
      %p124 = scmp.eq.s32.totalorder %s23, 3
      %p125 = por %p123, %p124
      %p126 = scmp.ne.s32.totalorder %s117, %s118
      %p127 = scmp.eq.s32.totalorder %s23, 0
      %p128 = por %p126, %p127
      %p129 = scmp.ne.s32.totalorder %s117, %s118
      %p130 = scmp.eq.s32.totalorder %s24, 3
      %p131 = por %p129, %p130
      %p133 = scmp.ne.s32.totalorder %s118, %s132
      %p134 = scmp.eq.s32.totalorder %s24, 0
      %p135 = por %p133, %p134
      %s137 = sadd.s32 %s136, 1
      %p140 = scmp.eq.s32.totalorder %s18, 3
      %p141 = scmp.ne.s32.totalorder %s136, %s138
      %p142 = scmp.eq.s32.totalorder %s18, 0
      %p143 = por %p141, %p142
      %p144 = scmp.ne.s32.totalorder %s136, %s138
      %p145 = scmp.eq.s32.totalorder %s23, 3
      %p146 = por %p144, %p145
      %p147 = scmp.ne.s32.totalorder %s138, %s139
      %p148 = scmp.eq.s32.totalorder %s23, 0
      %p149 = por %p147, %p148
      %p150 = scmp.ne.s32.totalorder %s138, %s139
      %p151 = scmp.eq.s32.totalorder %s24, 3
      %p152 = por %p150, %p151
      %p154 = scmp.ne.s32.totalorder %s139, %s153
      %p155 = scmp.eq.s32.totalorder %s24, 0
      %p156 = por %p154, %p155
      %s157 = ssub.s32 %s18, %s25
      %p158 = scmp.eq.s32.totalorder %s157, 0
      %s160 = sadd.s32 %s159, 1
      %s161 = scalar_select %p158, %s159, %s160
      %p164 = pneg %p158
      %p165 = scmp.eq.s32.totalorder %s18, 3
      %p166 = por %p164, %p165
      %p167 = scmp.ne.s32.totalorder %s159, %s162
      %p168 = scmp.eq.s32.totalorder %s18, 0
      %p169 = por %p167, %p168
      %p170 = scmp.ne.s32.totalorder %s159, %s162
      %p171 = scmp.eq.s32.totalorder %s23, 3
      %p172 = por %p170, %p171
      %p173 = scmp.ne.s32.totalorder %s162, %s163
      %p174 = scmp.eq.s32.totalorder %s23, 0
      %p175 = por %p173, %p174
      %p176 = scmp.ne.s32.totalorder %s162, %s163
      %p177 = scmp.eq.s32.totalorder %s24, 3
      %p178 = por %p176, %p177
      %p180 = scmp.ne.s32.totalorder %s163, %s179
      %p181 = scmp.eq.s32.totalorder %s24, 0
      %p182 = por %p180, %p181
      %p183 = scmp.le.s32.totalorder 1, %s18
      %p184 = scmp.lt.s32.totalorder %s18, 5
      %p185 = pnand %p183, %p184
      %p186 = pneg %p185
      // Predicated region
      $region9: #{tpu_custom_call.1} parent=5 // pred_check
        _
      $region10: #{tpu_custom_call.1} parent=5 // pred_check_branch
        %188 = sbr.rel (%p185) target = $region12
      $region11: #{tpu_custom_call.1} parent=5 // pred_region
        %s189 = ssub.s32 %s18, 1
        // Predicated region
        $region13: #{tpu_custom_call.1} parent=11 // pred_check
          %p190 = pneg %p65
        $region14: #{tpu_custom_call.1} parent=11 // pred_check_branch
          %192 = sbr.rel (%p190) target = $region16
        $region15: #{tpu_custom_call.1} parent=11 // pred_region
          _
        $region16: #{tpu_custom_call.1} parent=11 // pred_fallthru
          _
        // Predicated region
        $region17: #{tpu_custom_call.1} parent=11 // pred_check
          %p193 = pneg %p86
        $region18: #{tpu_custom_call.1} parent=11 // pred_check_branch
          %195 = sbr.rel (%p193) target = $region20
        $region19: #{tpu_custom_call.1} parent=11 // pred_region
          %197 = vsyncadd [#allocation5], 0
          %s198 = sshll.u32 %s2, 4
          %s199 = int_to_ptr.hbm [resolvable:$true] %s198
          %s200 = sshll.u32 [#allocation4], 4
          %s201 = int_to_ptr.vmem [resolvable:$true] %s200
          %206 = dma.hbm_to_vmem [thread:$0]  %s199, 6144, %s201, [#allocation5], 128, 128, 8
        $region20: #{tpu_custom_call.1} parent=11 // pred_fallthru
          _
        // Predicated region
        $region21: #{tpu_custom_call.1} parent=11 // pred_check
          %p207 = pneg %p107
        $region22: #{tpu_custom_call.1} parent=11 // pred_check_branch
          %209 = sbr.rel (%p207) target = $region24
        $region23: #{tpu_custom_call.1} parent=11 // pred_region
          %211 = vsyncadd [#allocation8], 0
          %s212 = sshll.u32 %s3, 4
          %s213 = int_to_ptr.hbm [resolvable:$true] %s212
          %s214 = sshll.u32 [#allocation7], 4
          %s215 = int_to_ptr.vmem [resolvable:$true] %s214
          %220 = dma.hbm_to_vmem [thread:$0]  %s213, 6144, %s215, [#allocation8], 128, 128, 8
        $region24: #{tpu_custom_call.1} parent=11 // pred_fallthru
          _
        // Predicated region
        $region25: #{tpu_custom_call.1} parent=11 // pred_check
          %p221 = pneg %p128
        $region26: #{tpu_custom_call.1} parent=11 // pred_check_branch
          %223 = sbr.rel (%p221) target = $region28
        $region27: #{tpu_custom_call.1} parent=11 // pred_region
          %225 = vsyncadd [#allocation8], 0
          %s226 = sshll.u32 %s4, 4
          %s227 = int_to_ptr.hbm [resolvable:$true] %s226
          %s228 = sshll.u32 [#allocation9], 4
          %s229 = int_to_ptr.vmem [resolvable:$true] %s228
          %234 = dma.hbm_to_vmem [thread:$0]  %s227, 6144, %s229, [#allocation8], 128, 128, 8
        $region28: #{tpu_custom_call.1} parent=11 // pred_fallthru
          _
        // Predicated region
        $region29: #{tpu_custom_call.1} parent=11 // pred_check
          %p235 = pneg %p149
        $region30: #{tpu_custom_call.1} parent=11 // pred_check_branch
          %237 = sbr.rel (%p235) target = $region32
        $region31: #{tpu_custom_call.1} parent=11 // pred_region
          %239 = vsyncadd [#allocation11], 0
          %s240 = sshll.u32 %s5, 4
          %s241 = int_to_ptr.hbm [resolvable:$true] %s240
          %s242 = sshll.u32 [#allocation10], 4
          %s243 = int_to_ptr.vmem [resolvable:$true] %s242
          %248 = dma.hbm_to_vmem [thread:$0]  %s241, 6144, %s243, [#allocation11], 128, 128, 8
        $region32: #{tpu_custom_call.1} parent=11 // pred_fallthru
          _
      $region12: #{tpu_custom_call.1} parent=5 // pred_fallthru
        _
      %p249 = scmp.lt.s32.totalorder %s18, 4
      // Predicated region
      $region33: #{tpu_custom_call.1} parent=5 // pred_check
        %p250 = pneg %p249
      $region34: #{tpu_custom_call.1} parent=5 // pred_check_branch
        %252 = sbr.rel (%p250) target = $region36
      $region35: #{tpu_custom_call.1} parent=5 // pred_region
        // Predicated region
        $region37: #{tpu_custom_call.1} parent=35 // pred_check
          %p253 = pneg %p38
        $region38: #{tpu_custom_call.1} parent=35 // pred_check_branch
          %255 = sbr.rel (%p253) target = $region40
        $region39: #{tpu_custom_call.1} parent=35 // pred_region
          %p256 = scmp.lt.s32.totalorder %s18, 3
          %s257 = scalar_select %p256, %s18, 3
          %s258 = smul.addr %s257, 2
          %s259 = smul.addr %s258, 8
          %s260 = scalar_lea.vmem %s0, %s259
        $region40: #{tpu_custom_call.1} parent=35 // pred_fallthru
          _
      $region36: #{tpu_custom_call.1} parent=5 // pred_fallthru
        _
      %p261 = scmp.le.s32.totalorder 1, %s18
      %p262 = scmp.lt.s32.totalorder %s18, 5
      %p263 = pnand %p261, %p262
      %p264 = pneg %p263
      // Predicated region
      $region41: #{tpu_custom_call.1} parent=5 // pred_check
        _
      $region42: #{tpu_custom_call.1} parent=5 // pred_check_branch
        %266 = sbr.rel (%p263) target = $region44
      $region43: #{tpu_custom_call.1} parent=5 // pred_region
        %s267 = ssub.s32 %s18, 1
        // Predicated region
        $region45: #{tpu_custom_call.1} parent=43 // pred_check
          %p268 = pneg %p86
        $region46: #{tpu_custom_call.1} parent=43 // pred_check_branch
          %270 = sbr.rel (%p268) target = $region48
        $region47: #{tpu_custom_call.1} parent=43 // pred_region
          %272 = dma.done [#allocation5], 6144
        $region48: #{tpu_custom_call.1} parent=43 // pred_fallthru
          _
        // Predicated region
        $region49: #{tpu_custom_call.1} parent=43 // pred_check
          %p273 = pneg %p107
        $region50: #{tpu_custom_call.1} parent=43 // pred_check_branch
          %275 = sbr.rel (%p273) target = $region52
        $region51: #{tpu_custom_call.1} parent=43 // pred_region
          %277 = dma.done [#allocation8], 6144
        $region52: #{tpu_custom_call.1} parent=43 // pred_fallthru
          _
        // Predicated region
        $region53: #{tpu_custom_call.1} parent=43 // pred_check
          %p278 = pneg %p128
        $region54: #{tpu_custom_call.1} parent=43 // pred_check_branch
          %280 = sbr.rel (%p278) target = $region56
        $region55: #{tpu_custom_call.1} parent=43 // pred_region
          %282 = dma.done [#allocation8], 6144
        $region56: #{tpu_custom_call.1} parent=43 // pred_fallthru
          _
        // Predicated region
        $region57: #{tpu_custom_call.1} parent=43 // pred_check
          %p283 = pneg %p149
        $region58: #{tpu_custom_call.1} parent=43 // pred_check_branch
          %285 = sbr.rel (%p283) target = $region60
        $region59: #{tpu_custom_call.1} parent=43 // pred_region
          %287 = dma.done [#allocation11], 6144
        $region60: #{tpu_custom_call.1} parent=43 // pred_fallthru
          _
        %p288 = scmp.lt.s32.totalorder %s23, 3
        %s289 = scalar_select %p288, %s23, 3
        %s290 = smul.addr %s289, 2
        %s291 = smul.addr %s290, 8
        %s292 = scalar_lea.vmem %s0, %s291
        %p293 = pneg %p44
        %p294 = pneg %p41
        %p295 = pneg %p65
        %p296 = pneg %p62
        %p297 = pneg %p86
        %p298 = pneg %p83
        %p299 = pneg %p107
        %p300 = pneg %p104
        %p301 = pneg %p128
        %p302 = pneg %p125
        %p303 = pneg %p149
        %p304 = pneg %p146
        %p305 = pneg %p175
        %p306 = pneg %p172
        %s307 = sand.u32 %s162, 1
        %s308 = scalar_lea.sflag [#allocation6], %s307
        %s309 = sand.u32 %s162, 1
        %s310 = smul.addr %s309, 8
        %s311 = scalar_lea.vmem [#allocation12], %s310
        %p312 = scmp.lt.s32.totalorder %s23, 3
        %s313 = scalar_select %p312, %s23, 3
        %s314 = smul.addr %s313, 2
        %s315 = smul.addr %s314, 8
        %s316 = scalar_lea.vmem %s0, %s315
        %317 = vst [vmem:[#allocation2 + $0x7] sm:$0x1] 0.0
        %318 = vst [vmem:[#allocation2 + $0x18] sm:$0x1] 0.0
        %v319 = vld [vmem:[%s316] sm:$0xff]
        %v320 = vld [vmem:[%s316 + $0x8] sm:$0xff]
        %v321 = vld [vmem:[%s1] sm:$0xf]
        %vm322 = vcmask 31744
        %v324 = vsel %vm322, %v319, 0
        %v327 = vsel %vm322, %v320, 0
        %vm329 = vcmask 1043456
        %v331 = vsel %vm329, %v321, 0
        %333 = vmatpush.msra.mxu0 0.0
        %334 = vmatpush.msra.mxu0 0.0
        %335 = vmatpush.msra.mxu0 0.0
        %336 = vmatpush.msra.mxu0 0.0
        %337 = vmatpush.msra.mxu0 0.0
        %338 = vmatpush.msra.mxu0 0.0
        %339 = vmatpush.msra.mxu0 0.0
        %340 = vmatpush.msra.mxu0 0.0
        %341 = vmatpush.msra.mxu0 0.0
        %342 = vmatpush.msra.mxu0 0.0
        %343 = vmatpush.msra.mxu0 0.0
        %344 = vmatpush.msra.mxu0 0.0
        %345 = vmatpush.msra.mxu0 0.0
        %346 = vmatpush.msra.mxu0 0.0
        %347 = vmatpush.msra.mxu0 0.0
        %348 = vmatpush.msra.mxu0 %v331
        %349 = vmatmul.f32.gmra.mxu0 %v324
        %v350 = vpop.f32.mrf.mxu0
        %v351 = vadd.f32 0.0, %v350
        %352 = vmatmul.f32.gmra.mxu0 %v327
        %v353 = vpop.f32.mrf.mxu0
        %v354 = vadd.f32 0.0, %v353
        %355 = vdwg.mxu0
        %356 = vst [vmem:[#allocation2 + $0x8] sm:$0xff] %v351
        %357 = vst [vmem:[#allocation2 + $0x10] sm:$0xff] %v354
        %v358 = vld [vmem:[#allocation2 + $0x7] sm:$0xff]
        %v359 = vld [vmem:[#allocation2 + $0xf] sm:$0xff]
        %v360 = vld [vmem:[#allocation4] sm:$0xff]
        %v361 = vld [vmem:[#allocation4 + $0x8] sm:$0xff]
        %v362 = vld [vmem:[#allocation4 + $0x10] sm:$0xff]
        %v363 = vld [vmem:[#allocation4 + $0x18] sm:$0xff]
        %v364 = vld [vmem:[#allocation4 + $0x20] sm:$0xff]
        %v365 = vld [vmem:[#allocation4 + $0x28] sm:$0xff]
        %v366 = vld [vmem:[#allocation4 + $0x30] sm:$0xff]
        %v367 = vld [vmem:[#allocation4 + $0x38] sm:$0xff]
        %v368 = vld [vmem:[#allocation4 + $0x40] sm:$0xff]
        %v369 = vld [vmem:[#allocation4 + $0x48] sm:$0xff]
        %v370 = vld [vmem:[#allocation4 + $0x50] sm:$0xff]
        %v371 = vld [vmem:[#allocation4 + $0x58] sm:$0xff]
        %v372 = vld [vmem:[#allocation4 + $0x60] sm:$0xff]
        %v373 = vld [vmem:[#allocation4 + $0x68] sm:$0xff]
        %v374 = vld [vmem:[#allocation4 + $0x70] sm:$0xff]
        %v375 = vld [vmem:[#allocation4 + $0x78] sm:$0xff]
        %v376 = vld [vmem:[#allocation2 + $0x8] sm:$0xff]
        %v377 = vld [vmem:[#allocation2 + $0x10] sm:$0xff]
        %s378 = scalar_lea.vmem [#allocation4], 128
        %v379 = vld [vmem:[%s378] sm:$0xff]
        %v380 = vld [vmem:[%s378 + $0x8] sm:$0xff]
        %v381 = vld [vmem:[%s378 + $0x10] sm:$0xff]
        %v382 = vld [vmem:[%s378 + $0x18] sm:$0xff]
        %v383 = vld [vmem:[%s378 + $0x20] sm:$0xff]
        %v384 = vld [vmem:[%s378 + $0x28] sm:$0xff]
        %v385 = vld [vmem:[%s378 + $0x30] sm:$0xff]
        %v386 = vld [vmem:[%s378 + $0x38] sm:$0xff]
        %v387 = vld [vmem:[%s378 + $0x40] sm:$0xff]
        %v388 = vld [vmem:[%s378 + $0x48] sm:$0xff]
        %v389 = vld [vmem:[%s378 + $0x50] sm:$0xff]
        %v390 = vld [vmem:[%s378 + $0x58] sm:$0xff]
        %v391 = vld [vmem:[%s378 + $0x60] sm:$0xff]
        %v392 = vld [vmem:[%s378 + $0x68] sm:$0xff]
        %v393 = vld [vmem:[%s378 + $0x70] sm:$0xff]
        %v394 = vld [vmem:[%s378 + $0x78] sm:$0xff]
        %395 = vmatpush.msra.mxu0 %v394
        %396 = vmatpush.msra.mxu0 %v393
        %397 = vmatpush.msra.mxu0 %v392
        %398 = vmatpush.msra.mxu0 %v391
        %399 = vmatpush.msra.mxu0 %v390
        %400 = vmatpush.msra.mxu0 %v389
        %401 = vmatpush.msra.mxu0 %v388
        %402 = vmatpush.msra.mxu0 %v387
        %403 = vmatpush.msra.mxu0 %v386
        %404 = vmatpush.msra.mxu0 %v385
        %405 = vmatpush.msra.mxu0 %v384
        %406 = vmatpush.msra.mxu0 %v383
        %407 = vmatpush.msra.mxu0 %v382
        %408 = vmatpush.msra.mxu0 %v381
        %409 = vmatpush.msra.mxu0 %v380
        %410 = vmatpush.msra.mxu0 %v379
        %411 = vmatmul.f32.gmra.mxu0 %v376
        %v412 = vpop.f32.mrf.mxu0
        %v413 = vadd.f32 0.0, %v412
        %414 = vmatmul.f32.gmra.mxu0 %v377
        %v415 = vpop.f32.mrf.mxu0
        %v416 = vadd.f32 0.0, %v415
        %417 = vdwg.mxu0
        %418 = vmatpush.msra.mxu0 %v375
        %419 = vmatpush.msra.mxu0 %v374
        %420 = vmatpush.msra.mxu0 %v373
        %421 = vmatpush.msra.mxu0 %v372
        %422 = vmatpush.msra.mxu0 %v371
        %423 = vmatpush.msra.mxu0 %v370
        %424 = vmatpush.msra.mxu0 %v369
        %425 = vmatpush.msra.mxu0 %v368
        %426 = vmatpush.msra.mxu0 %v367
        %427 = vmatpush.msra.mxu0 %v366
        %428 = vmatpush.msra.mxu0 %v365
        %429 = vmatpush.msra.mxu0 %v364
        %430 = vmatpush.msra.mxu0 %v363
        %431 = vmatpush.msra.mxu0 %v362
        %432 = vmatpush.msra.mxu0 %v361
        %433 = vmatpush.msra.mxu0 %v360
        %434 = vmatmul.f32.gmra.mxu0 %v358
        %v435 = vpop.f32.mrf.mxu0
        %v436 = vadd.f32 %v413, %v435
        %437 = vmatmul.f32.gmra.mxu0 %v359
        %v438 = vpop.f32.mrf.mxu0
        %v439 = vadd.f32 %v416, %v438
        %440 = vdwg.mxu0
        %v441 = vld [vmem:[#allocation2 + $0x9] sm:$0xff]
        %v442 = vld [vmem:[#allocation2 + $0x11] sm:$0xff]
        %s443 = scalar_lea.vmem [#allocation4], 256
        %v444 = vld [vmem:[%s443] sm:$0xff]
        %v445 = vld [vmem:[%s443 + $0x8] sm:$0xff]
        %v446 = vld [vmem:[%s443 + $0x10] sm:$0xff]
        %v447 = vld [vmem:[%s443 + $0x18] sm:$0xff]
        %v448 = vld [vmem:[%s443 + $0x20] sm:$0xff]
        %v449 = vld [vmem:[%s443 + $0x28] sm:$0xff]
        %v450 = vld [vmem:[%s443 + $0x30] sm:$0xff]
        %v451 = vld [vmem:[%s443 + $0x38] sm:$0xff]
        %v452 = vld [vmem:[%s443 + $0x40] sm:$0xff]
        %v453 = vld [vmem:[%s443 + $0x48] sm:$0xff]
        %v454 = vld [vmem:[%s443 + $0x50] sm:$0xff]
        %v455 = vld [vmem:[%s443 + $0x58] sm:$0xff]
        %v456 = vld [vmem:[%s443 + $0x60] sm:$0xff]
        %v457 = vld [vmem:[%s443 + $0x68] sm:$0xff]
        %v458 = vld [vmem:[%s443 + $0x70] sm:$0xff]
        %v459 = vld [vmem:[%s443 + $0x78] sm:$0xff]
        %460 = vmatpush.msra.mxu0 %v459
        %461 = vmatpush.msra.mxu0 %v458
        %462 = vmatpush.msra.mxu0 %v457
        %463 = vmatpush.msra.mxu0 %v456
        %464 = vmatpush.msra.mxu0 %v455
        %465 = vmatpush.msra.mxu0 %v454
        %466 = vmatpush.msra.mxu0 %v453
        %467 = vmatpush.msra.mxu0 %v452
        %468 = vmatpush.msra.mxu0 %v451
        %469 = vmatpush.msra.mxu0 %v450
        %470 = vmatpush.msra.mxu0 %v449
        %471 = vmatpush.msra.mxu0 %v448
        %472 = vmatpush.msra.mxu0 %v447
        %473 = vmatpush.msra.mxu0 %v446
        %474 = vmatpush.msra.mxu0 %v445
        %475 = vmatpush.msra.mxu0 %v444
        %476 = vmatmul.f32.gmra.mxu0 %v441
        %v477 = vpop.f32.mrf.mxu0
        %v478 = vadd.f32 0.0, %v477
        %479 = vmatmul.f32.gmra.mxu0 %v442
        %v480 = vpop.f32.mrf.mxu0
        %v481 = vadd.f32 0.0, %v480
        %482 = vdwg.mxu0
        %v483 = vadd.f32 %v436, %v478
        %v484 = vadd.f32 %v439, %v481
        %v485 = vmax.f32 %v483, 0.0
        %v486 = vmax.f32 %v484, 0.0
        %487 = vst [vmem:[#allocation2 + $0x8] sm:$0xff] %v485
        %488 = vst [vmem:[#allocation2 + $0x10] sm:$0xff] %v486
        %v489 = vld [vmem:[#allocation2 + $0x7] sm:$0xff]
        %v490 = vld [vmem:[#allocation2 + $0xf] sm:$0xff]
        %v491 = vld [vmem:[#allocation7] sm:$0xff]
        %v492 = vld [vmem:[#allocation7 + $0x8] sm:$0xff]
        %v493 = vld [vmem:[#allocation7 + $0x10] sm:$0xff]
        %v494 = vld [vmem:[#allocation7 + $0x18] sm:$0xff]
        %v495 = vld [vmem:[#allocation7 + $0x20] sm:$0xff]
        %v496 = vld [vmem:[#allocation7 + $0x28] sm:$0xff]
        %v497 = vld [vmem:[#allocation7 + $0x30] sm:$0xff]
        %v498 = vld [vmem:[#allocation7 + $0x38] sm:$0xff]
        %v499 = vld [vmem:[#allocation7 + $0x40] sm:$0xff]
        %v500 = vld [vmem:[#allocation7 + $0x48] sm:$0xff]
        %v501 = vld [vmem:[#allocation7 + $0x50] sm:$0xff]
        %v502 = vld [vmem:[#allocation7 + $0x58] sm:$0xff]
        %v503 = vld [vmem:[#allocation7 + $0x60] sm:$0xff]
        %v504 = vld [vmem:[#allocation7 + $0x68] sm:$0xff]
        %v505 = vld [vmem:[#allocation7 + $0x70] sm:$0xff]
        %v506 = vld [vmem:[#allocation7 + $0x78] sm:$0xff]
        %v507 = vld [vmem:[#allocation2 + $0x8] sm:$0xff]
        %v508 = vld [vmem:[#allocation2 + $0x10] sm:$0xff]
        %s509 = scalar_lea.vmem [#allocation7], 128
        %v510 = vld [vmem:[%s509] sm:$0xff]
        %v511 = vld [vmem:[%s509 + $0x8] sm:$0xff]
        %v512 = vld [vmem:[%s509 + $0x10] sm:$0xff]
        %v513 = vld [vmem:[%s509 + $0x18] sm:$0xff]
        %v514 = vld [vmem:[%s509 + $0x20] sm:$0xff]
        %v515 = vld [vmem:[%s509 + $0x28] sm:$0xff]
        %v516 = vld [vmem:[%s509 + $0x30] sm:$0xff]
        %v517 = vld [vmem:[%s509 + $0x38] sm:$0xff]
        %v518 = vld [vmem:[%s509 + $0x40] sm:$0xff]
        %v519 = vld [vmem:[%s509 + $0x48] sm:$0xff]
        %v520 = vld [vmem:[%s509 + $0x50] sm:$0xff]
        %v521 = vld [vmem:[%s509 + $0x58] sm:$0xff]
        %v522 = vld [vmem:[%s509 + $0x60] sm:$0xff]
        %v523 = vld [vmem:[%s509 + $0x68] sm:$0xff]
        %v524 = vld [vmem:[%s509 + $0x70] sm:$0xff]
        %v525 = vld [vmem:[%s509 + $0x78] sm:$0xff]
        %526 = vmatpush.msra.mxu0 %v525
        %527 = vmatpush.msra.mxu0 %v524
        %528 = vmatpush.msra.mxu0 %v523
        %529 = vmatpush.msra.mxu0 %v522
        %530 = vmatpush.msra.mxu0 %v521
        %531 = vmatpush.msra.mxu0 %v520
        %532 = vmatpush.msra.mxu0 %v519
        %533 = vmatpush.msra.mxu0 %v518
        %534 = vmatpush.msra.mxu0 %v517
        %535 = vmatpush.msra.mxu0 %v516
        %536 = vmatpush.msra.mxu0 %v515
        %537 = vmatpush.msra.mxu0 %v514
        %538 = vmatpush.msra.mxu0 %v513
        %539 = vmatpush.msra.mxu0 %v512
        %540 = vmatpush.msra.mxu0 %v511
        %541 = vmatpush.msra.mxu0 %v510
        %542 = vmatmul.f32.gmra.mxu0 %v507
        %v543 = vpop.f32.mrf.mxu0
        %v544 = vadd.f32 0.0, %v543
        %545 = vmatmul.f32.gmra.mxu0 %v508
        %v546 = vpop.f32.mrf.mxu0
        %v547 = vadd.f32 0.0, %v546
        %548 = vdwg.mxu0
        %549 = vmatpush.msra.mxu0 %v506
        %550 = vmatpush.msra.mxu0 %v505
        %551 = vmatpush.msra.mxu0 %v504
        %552 = vmatpush.msra.mxu0 %v503
        %553 = vmatpush.msra.mxu0 %v502
        %554 = vmatpush.msra.mxu0 %v501
        %555 = vmatpush.msra.mxu0 %v500
        %556 = vmatpush.msra.mxu0 %v499
        %557 = vmatpush.msra.mxu0 %v498
        %558 = vmatpush.msra.mxu0 %v497
        %559 = vmatpush.msra.mxu0 %v496
        %560 = vmatpush.msra.mxu0 %v495
        %561 = vmatpush.msra.mxu0 %v494
        %562 = vmatpush.msra.mxu0 %v493
        %563 = vmatpush.msra.mxu0 %v492
        %564 = vmatpush.msra.mxu0 %v491
        %565 = vmatmul.f32.gmra.mxu0 %v489
        %v566 = vpop.f32.mrf.mxu0
        %v567 = vadd.f32 %v544, %v566
        %568 = vmatmul.f32.gmra.mxu0 %v490
        %v569 = vpop.f32.mrf.mxu0
        %v570 = vadd.f32 %v547, %v569
        %571 = vdwg.mxu0
        %v572 = vld [vmem:[#allocation2 + $0x9] sm:$0xff]
        %v573 = vld [vmem:[#allocation2 + $0x11] sm:$0xff]
        %s574 = scalar_lea.vmem [#allocation7], 256
        %v575 = vld [vmem:[%s574] sm:$0xff]
        %v576 = vld [vmem:[%s574 + $0x8] sm:$0xff]
        %v577 = vld [vmem:[%s574 + $0x10] sm:$0xff]
        %v578 = vld [vmem:[%s574 + $0x18] sm:$0xff]
        %v579 = vld [vmem:[%s574 + $0x20] sm:$0xff]
        %v580 = vld [vmem:[%s574 + $0x28] sm:$0xff]
        %v581 = vld [vmem:[%s574 + $0x30] sm:$0xff]
        %v582 = vld [vmem:[%s574 + $0x38] sm:$0xff]
        %v583 = vld [vmem:[%s574 + $0x40] sm:$0xff]
        %v584 = vld [vmem:[%s574 + $0x48] sm:$0xff]
        %v585 = vld [vmem:[%s574 + $0x50] sm:$0xff]
        %v586 = vld [vmem:[%s574 + $0x58] sm:$0xff]
        %v587 = vld [vmem:[%s574 + $0x60] sm:$0xff]
        %v588 = vld [vmem:[%s574 + $0x68] sm:$0xff]
        %v589 = vld [vmem:[%s574 + $0x70] sm:$0xff]
        %v590 = vld [vmem:[%s574 + $0x78] sm:$0xff]
        %591 = vmatpush.msra.mxu0 %v590
        %592 = vmatpush.msra.mxu0 %v589
        %593 = vmatpush.msra.mxu0 %v588
        %594 = vmatpush.msra.mxu0 %v587
        %595 = vmatpush.msra.mxu0 %v586
        %596 = vmatpush.msra.mxu0 %v585
        %597 = vmatpush.msra.mxu0 %v584
        %598 = vmatpush.msra.mxu0 %v583
        %599 = vmatpush.msra.mxu0 %v582
        %600 = vmatpush.msra.mxu0 %v581
        %601 = vmatpush.msra.mxu0 %v580
        %602 = vmatpush.msra.mxu0 %v579
        %603 = vmatpush.msra.mxu0 %v578
        %604 = vmatpush.msra.mxu0 %v577
        %605 = vmatpush.msra.mxu0 %v576
        %606 = vmatpush.msra.mxu0 %v575
        %607 = vmatmul.f32.gmra.mxu0 %v572
        %v608 = vpop.f32.mrf.mxu0
        %v609 = vadd.f32 0.0, %v608
        %610 = vmatmul.f32.gmra.mxu0 %v573
        %v611 = vpop.f32.mrf.mxu0
        %v612 = vadd.f32 0.0, %v611
        %613 = vdwg.mxu0
        %v614 = vadd.f32 %v567, %v609
        %v615 = vadd.f32 %v570, %v612
        %v616 = vadd.f32 %v614, %v351
        %v617 = vadd.f32 %v615, %v354
        %v618 = vmax.f32 %v616, 0.0
        %v619 = vmax.f32 %v617, 0.0
        %620 = vst [vmem:[#allocation2 + $0x8] sm:$0xff] %v618
        %621 = vst [vmem:[#allocation2 + $0x10] sm:$0xff] %v619
        %v622 = vld [vmem:[#allocation2 + $0x7] sm:$0xff]
        %v623 = vld [vmem:[#allocation2 + $0xf] sm:$0xff]
        %v624 = vld [vmem:[#allocation9] sm:$0xff]
        %v625 = vld [vmem:[#allocation9 + $0x8] sm:$0xff]
        %v626 = vld [vmem:[#allocation9 + $0x10] sm:$0xff]
        %v627 = vld [vmem:[#allocation9 + $0x18] sm:$0xff]
        %v628 = vld [vmem:[#allocation9 + $0x20] sm:$0xff]
        %v629 = vld [vmem:[#allocation9 + $0x28] sm:$0xff]
        %v630 = vld [vmem:[#allocation9 + $0x30] sm:$0xff]
        %v631 = vld [vmem:[#allocation9 + $0x38] sm:$0xff]
        %v632 = vld [vmem:[#allocation9 + $0x40] sm:$0xff]
        %v633 = vld [vmem:[#allocation9 + $0x48] sm:$0xff]
        %v634 = vld [vmem:[#allocation9 + $0x50] sm:$0xff]
        %v635 = vld [vmem:[#allocation9 + $0x58] sm:$0xff]
        %v636 = vld [vmem:[#allocation9 + $0x60] sm:$0xff]
        %v637 = vld [vmem:[#allocation9 + $0x68] sm:$0xff]
        %v638 = vld [vmem:[#allocation9 + $0x70] sm:$0xff]
        %v639 = vld [vmem:[#allocation9 + $0x78] sm:$0xff]
        %v640 = vld [vmem:[#allocation2 + $0x8] sm:$0xff]
        %v641 = vld [vmem:[#allocation2 + $0x10] sm:$0xff]
        %s642 = scalar_lea.vmem [#allocation9], 128
        %v643 = vld [vmem:[%s642] sm:$0xff]
        %v644 = vld [vmem:[%s642 + $0x8] sm:$0xff]
        %v645 = vld [vmem:[%s642 + $0x10] sm:$0xff]
        %v646 = vld [vmem:[%s642 + $0x18] sm:$0xff]
        %v647 = vld [vmem:[%s642 + $0x20] sm:$0xff]
        %v648 = vld [vmem:[%s642 + $0x28] sm:$0xff]
        %v649 = vld [vmem:[%s642 + $0x30] sm:$0xff]
        %v650 = vld [vmem:[%s642 + $0x38] sm:$0xff]
        %v651 = vld [vmem:[%s642 + $0x40] sm:$0xff]
        %v652 = vld [vmem:[%s642 + $0x48] sm:$0xff]
        %v653 = vld [vmem:[%s642 + $0x50] sm:$0xff]
        %v654 = vld [vmem:[%s642 + $0x58] sm:$0xff]
        %v655 = vld [vmem:[%s642 + $0x60] sm:$0xff]
        %v656 = vld [vmem:[%s642 + $0x68] sm:$0xff]
        %v657 = vld [vmem:[%s642 + $0x70] sm:$0xff]
        %v658 = vld [vmem:[%s642 + $0x78] sm:$0xff]
        %659 = vmatpush.msra.mxu0 %v658
        %660 = vmatpush.msra.mxu0 %v657
        %661 = vmatpush.msra.mxu0 %v656
        %662 = vmatpush.msra.mxu0 %v655
        %663 = vmatpush.msra.mxu0 %v654
        %664 = vmatpush.msra.mxu0 %v653
        %665 = vmatpush.msra.mxu0 %v652
        %666 = vmatpush.msra.mxu0 %v651
        %667 = vmatpush.msra.mxu0 %v650
        %668 = vmatpush.msra.mxu0 %v649
        %669 = vmatpush.msra.mxu0 %v648
        %670 = vmatpush.msra.mxu0 %v647
        %671 = vmatpush.msra.mxu0 %v646
        %672 = vmatpush.msra.mxu0 %v645
        %673 = vmatpush.msra.mxu0 %v644
        %674 = vmatpush.msra.mxu0 %v643
        %675 = vmatmul.f32.gmra.mxu0 %v640
        %v676 = vpop.f32.mrf.mxu0
        %v677 = vadd.f32 0.0, %v676
        %678 = vmatmul.f32.gmra.mxu0 %v641
        %v679 = vpop.f32.mrf.mxu0
        %v680 = vadd.f32 0.0, %v679
        %681 = vdwg.mxu0
        %682 = vmatpush.msra.mxu0 %v639
        %683 = vmatpush.msra.mxu0 %v638
        %684 = vmatpush.msra.mxu0 %v637
        %685 = vmatpush.msra.mxu0 %v636
        %686 = vmatpush.msra.mxu0 %v635
        %687 = vmatpush.msra.mxu0 %v634
        %688 = vmatpush.msra.mxu0 %v633
        %689 = vmatpush.msra.mxu0 %v632
        %690 = vmatpush.msra.mxu0 %v631
        %691 = vmatpush.msra.mxu0 %v630
        %692 = vmatpush.msra.mxu0 %v629
        %693 = vmatpush.msra.mxu0 %v628
        %694 = vmatpush.msra.mxu0 %v627
        %695 = vmatpush.msra.mxu0 %v626
        %696 = vmatpush.msra.mxu0 %v625
        %697 = vmatpush.msra.mxu0 %v624
        %698 = vmatmul.f32.gmra.mxu0 %v622
        %v699 = vpop.f32.mrf.mxu0
        %v700 = vadd.f32 %v677, %v699
        %701 = vmatmul.f32.gmra.mxu0 %v623
        %v702 = vpop.f32.mrf.mxu0
        %v703 = vadd.f32 %v680, %v702
        %704 = vdwg.mxu0
        %v705 = vld [vmem:[#allocation2 + $0x9] sm:$0xff]
        %v706 = vld [vmem:[#allocation2 + $0x11] sm:$0xff]
        %s707 = scalar_lea.vmem [#allocation9], 256
        %v708 = vld [vmem:[%s707] sm:$0xff]
        %v709 = vld [vmem:[%s707 + $0x8] sm:$0xff]
        %v710 = vld [vmem:[%s707 + $0x10] sm:$0xff]
        %v711 = vld [vmem:[%s707 + $0x18] sm:$0xff]
        %v712 = vld [vmem:[%s707 + $0x20] sm:$0xff]
        %v713 = vld [vmem:[%s707 + $0x28] sm:$0xff]
        %v714 = vld [vmem:[%s707 + $0x30] sm:$0xff]
        %v715 = vld [vmem:[%s707 + $0x38] sm:$0xff]
        %v716 = vld [vmem:[%s707 + $0x40] sm:$0xff]
        %v717 = vld [vmem:[%s707 + $0x48] sm:$0xff]
        %v718 = vld [vmem:[%s707 + $0x50] sm:$0xff]
        %v719 = vld [vmem:[%s707 + $0x58] sm:$0xff]
        %v720 = vld [vmem:[%s707 + $0x60] sm:$0xff]
        %v721 = vld [vmem:[%s707 + $0x68] sm:$0xff]
        %v722 = vld [vmem:[%s707 + $0x70] sm:$0xff]
        %v723 = vld [vmem:[%s707 + $0x78] sm:$0xff]
        %724 = vmatpush.msra.mxu0 %v723
        %725 = vmatpush.msra.mxu0 %v722
        %726 = vmatpush.msra.mxu0 %v721
        %727 = vmatpush.msra.mxu0 %v720
        %728 = vmatpush.msra.mxu0 %v719
        %729 = vmatpush.msra.mxu0 %v718
        %730 = vmatpush.msra.mxu0 %v717
        %731 = vmatpush.msra.mxu0 %v716
        %732 = vmatpush.msra.mxu0 %v715
        %733 = vmatpush.msra.mxu0 %v714
        %734 = vmatpush.msra.mxu0 %v713
        %735 = vmatpush.msra.mxu0 %v712
        %736 = vmatpush.msra.mxu0 %v711
        %737 = vmatpush.msra.mxu0 %v710
        %738 = vmatpush.msra.mxu0 %v709
        %739 = vmatpush.msra.mxu0 %v708
        %740 = vmatmul.f32.gmra.mxu0 %v705
        %v741 = vpop.f32.mrf.mxu0
        %v742 = vadd.f32 0.0, %v741
        %743 = vmatmul.f32.gmra.mxu0 %v706
        %v744 = vpop.f32.mrf.mxu0
        %v745 = vadd.f32 0.0, %v744
        %746 = vdwg.mxu0
        %v747 = vadd.f32 %v700, %v742
        %v748 = vadd.f32 %v703, %v745
        %v749 = vmax.f32 %v747, 0.0
        %v750 = vmax.f32 %v748, 0.0
        %751 = vst [vmem:[#allocation2 + $0x8] sm:$0xff] %v749
        %752 = vst [vmem:[#allocation2 + $0x10] sm:$0xff] %v750
        %v753 = vld [vmem:[#allocation2 + $0x7] sm:$0xff]
        %v754 = vld [vmem:[#allocation2 + $0xf] sm:$0xff]
        %v755 = vld [vmem:[#allocation10] sm:$0xff]
        %v756 = vld [vmem:[#allocation10 + $0x8] sm:$0xff]
        %v757 = vld [vmem:[#allocation10 + $0x10] sm:$0xff]
        %v758 = vld [vmem:[#allocation10 + $0x18] sm:$0xff]
        %v759 = vld [vmem:[#allocation10 + $0x20] sm:$0xff]
        %v760 = vld [vmem:[#allocation10 + $0x28] sm:$0xff]
        %v761 = vld [vmem:[#allocation10 + $0x30] sm:$0xff]
        %v762 = vld [vmem:[#allocation10 + $0x38] sm:$0xff]
        %v763 = vld [vmem:[#allocation10 + $0x40] sm:$0xff]
        %v764 = vld [vmem:[#allocation10 + $0x48] sm:$0xff]
        %v765 = vld [vmem:[#allocation10 + $0x50] sm:$0xff]
        %v766 = vld [vmem:[#allocation10 + $0x58] sm:$0xff]
        %v767 = vld [vmem:[#allocation10 + $0x60] sm:$0xff]
        %v768 = vld [vmem:[#allocation10 + $0x68] sm:$0xff]
        %v769 = vld [vmem:[#allocation10 + $0x70] sm:$0xff]
        %v770 = vld [vmem:[#allocation10 + $0x78] sm:$0xff]
        %v771 = vld [vmem:[#allocation2 + $0x8] sm:$0xff]
        %v772 = vld [vmem:[#allocation2 + $0x10] sm:$0xff]
        %s773 = scalar_lea.vmem [#allocation10], 128
        %v774 = vld [vmem:[%s773] sm:$0xff]
        %v775 = vld [vmem:[%s773 + $0x8] sm:$0xff]
        %v776 = vld [vmem:[%s773 + $0x10] sm:$0xff]
        %v777 = vld [vmem:[%s773 + $0x18] sm:$0xff]
        %v778 = vld [vmem:[%s773 + $0x20] sm:$0xff]
        %v779 = vld [vmem:[%s773 + $0x28] sm:$0xff]
        %v780 = vld [vmem:[%s773 + $0x30] sm:$0xff]
        %v781 = vld [vmem:[%s773 + $0x38] sm:$0xff]
        %v782 = vld [vmem:[%s773 + $0x40] sm:$0xff]
        %v783 = vld [vmem:[%s773 + $0x48] sm:$0xff]
        %v784 = vld [vmem:[%s773 + $0x50] sm:$0xff]
        %v785 = vld [vmem:[%s773 + $0x58] sm:$0xff]
        %v786 = vld [vmem:[%s773 + $0x60] sm:$0xff]
        %v787 = vld [vmem:[%s773 + $0x68] sm:$0xff]
        %v788 = vld [vmem:[%s773 + $0x70] sm:$0xff]
        %v789 = vld [vmem:[%s773 + $0x78] sm:$0xff]
        %790 = vmatpush.msra.mxu0 %v789
        %791 = vmatpush.msra.mxu0 %v788
        %792 = vmatpush.msra.mxu0 %v787
        %793 = vmatpush.msra.mxu0 %v786
        %794 = vmatpush.msra.mxu0 %v785
        %795 = vmatpush.msra.mxu0 %v784
        %796 = vmatpush.msra.mxu0 %v783
        %797 = vmatpush.msra.mxu0 %v782
        %798 = vmatpush.msra.mxu0 %v781
        %799 = vmatpush.msra.mxu0 %v780
        %800 = vmatpush.msra.mxu0 %v779
        %801 = vmatpush.msra.mxu0 %v778
        %802 = vmatpush.msra.mxu0 %v777
        %803 = vmatpush.msra.mxu0 %v776
        %804 = vmatpush.msra.mxu0 %v775
        %805 = vmatpush.msra.mxu0 %v774
        %806 = vmatmul.f32.gmra.mxu0 %v771
        %v807 = vpop.f32.mrf.mxu0
        %v808 = vadd.f32 0.0, %v807
        %809 = vmatmul.f32.gmra.mxu0 %v772
        %v810 = vpop.f32.mrf.mxu0
        %v811 = vadd.f32 0.0, %v810
        %812 = vdwg.mxu0
        %813 = vmatpush.msra.mxu0 %v770
        %814 = vmatpush.msra.mxu0 %v769
        %815 = vmatpush.msra.mxu0 %v768
        %816 = vmatpush.msra.mxu0 %v767
        %817 = vmatpush.msra.mxu0 %v766
        %818 = vmatpush.msra.mxu0 %v765
        %819 = vmatpush.msra.mxu0 %v764
        %820 = vmatpush.msra.mxu0 %v763
        %821 = vmatpush.msra.mxu0 %v762
        %822 = vmatpush.msra.mxu0 %v761
        %823 = vmatpush.msra.mxu0 %v760
        %824 = vmatpush.msra.mxu0 %v759
        %825 = vmatpush.msra.mxu0 %v758
        %826 = vmatpush.msra.mxu0 %v757
        %827 = vmatpush.msra.mxu0 %v756
        %828 = vmatpush.msra.mxu0 %v755
        %829 = vmatmul.f32.gmra.mxu0 %v753
        %v830 = vpop.f32.mrf.mxu0
        %v831 = vadd.f32 %v808, %v830
        %832 = vmatmul.f32.gmra.mxu0 %v754
        %v833 = vpop.f32.mrf.mxu0
        %v834 = vadd.f32 %v811, %v833
        %835 = vdwg.mxu0
        %v836 = vld [vmem:[#allocation2 + $0x9] sm:$0xff]
        %v837 = vld [vmem:[#allocation2 + $0x11] sm:$0xff]
        %s838 = scalar_lea.vmem [#allocation10], 256
        %v839 = vld [vmem:[%s838] sm:$0xff]
        %v840 = vld [vmem:[%s838 + $0x8] sm:$0xff]
        %v841 = vld [vmem:[%s838 + $0x10] sm:$0xff]
        %v842 = vld [vmem:[%s838 + $0x18] sm:$0xff]
        %v843 = vld [vmem:[%s838 + $0x20] sm:$0xff]
        %v844 = vld [vmem:[%s838 + $0x28] sm:$0xff]
        %v845 = vld [vmem:[%s838 + $0x30] sm:$0xff]
        %v846 = vld [vmem:[%s838 + $0x38] sm:$0xff]
        %v847 = vld [vmem:[%s838 + $0x40] sm:$0xff]
        %v848 = vld [vmem:[%s838 + $0x48] sm:$0xff]
        %v849 = vld [vmem:[%s838 + $0x50] sm:$0xff]
        %v850 = vld [vmem:[%s838 + $0x58] sm:$0xff]
        %v851 = vld [vmem:[%s838 + $0x60] sm:$0xff]
        %v852 = vld [vmem:[%s838 + $0x68] sm:$0xff]
        %v853 = vld [vmem:[%s838 + $0x70] sm:$0xff]
        %v854 = vld [vmem:[%s838 + $0x78] sm:$0xff]
        %855 = vmatpush.msra.mxu0 %v854
        %856 = vmatpush.msra.mxu0 %v853
        %857 = vmatpush.msra.mxu0 %v852
        %858 = vmatpush.msra.mxu0 %v851
        %859 = vmatpush.msra.mxu0 %v850
        %860 = vmatpush.msra.mxu0 %v849
        %861 = vmatpush.msra.mxu0 %v848
        %862 = vmatpush.msra.mxu0 %v847
        %863 = vmatpush.msra.mxu0 %v846
        %864 = vmatpush.msra.mxu0 %v845
        %865 = vmatpush.msra.mxu0 %v844
        %866 = vmatpush.msra.mxu0 %v843
        %867 = vmatpush.msra.mxu0 %v842
        %868 = vmatpush.msra.mxu0 %v841
        %869 = vmatpush.msra.mxu0 %v840
        %870 = vmatpush.msra.mxu0 %v839
        %871 = vmatmul.f32.gmra.mxu0 %v836
        %v872 = vpop.f32.mrf.mxu0
        %v873 = vadd.f32 0.0, %v872
        %874 = vmatmul.f32.gmra.mxu0 %v837
        %v875 = vpop.f32.mrf.mxu0
        %v876 = vadd.f32 0.0, %v875
        %877 = vdwg.mxu0
        %v878 = vadd.f32 %v831, %v873
        %v879 = vadd.f32 %v834, %v876
        %v880 = vadd.f32 %v878, %v618
        %v881 = vadd.f32 %v879, %v619
        %v882 = vmax.f32 %v880, 0.0
        %v883 = vmax.f32 %v881, 0.0
        %884 = vst [vmem:[#allocation3] sm:$0xff] %v882
        %885 = vst [vmem:[#allocation3 + $0x8] sm:$0xff] %v883
        %v886 = vld [vmem:[#allocation3] ss:$2 sm:$0xff]
        %s887 = scalar_lea.vmem [#allocation3], 1
        %v888 = vld [vmem:[%s887] ss:$2 sm:$0xff]
        %v889 = vmax.f32 %v886, %v888
        %890 = vst [vmem:[%s311] sm:$0xff] %v889
        %s891 = sand.u32 %s162, 1
        %s892 = scalar_lea.sflag [#allocation6], %s891
        %s893 = sand.u32 %s162, 1
        %s894 = smul.addr %s893, 8
        %s895 = scalar_lea.vmem [#allocation12], %s894
        // Predicated region
        $region61: #{tpu_custom_call.1} parent=43 // pred_check
          %p896 = pneg %p172
        $region62: #{tpu_custom_call.1} parent=43 // pred_check_branch
          %898 = sbr.rel (%p896) target = $region64
        $region63: #{tpu_custom_call.1} parent=43 // pred_region
          %900 = vsyncadd %s892, 0
          %s901 = smul.addr %s23, 8
          %s902 = scalar_lea.hbm %s6, %s901
          %s904 = sshll.u32 %s895, 4
          %s905 = int_to_ptr.vmem [resolvable:$true] %s904
          %s906 = sshll.u32 %s902, 4
          %s907 = int_to_ptr.hbm [resolvable:$true] %s906
          %909 = dma.vmem_to_hbm [thread:$0]  %s905, 128, %s907, %s892
        $region64: #{tpu_custom_call.1} parent=43 // pred_fallthru
          _
      $region44: #{tpu_custom_call.1} parent=5 // pred_fallthru
        _
      %p910 = scmp.le.s32.totalorder 2, %s18
      // Predicated region
      $region65: #{tpu_custom_call.1} parent=5 // pred_check
        %p911 = pneg %p910
      $region66: #{tpu_custom_call.1} parent=5 // pred_check_branch
        %913 = sbr.rel (%p911) target = $region68
      $region67: #{tpu_custom_call.1} parent=5 // pred_region
        %s914 = ssub.s32 %s18, 2
        // Predicated region
        $region69: #{tpu_custom_call.1} parent=67 // pred_check
          %p915 = pneg %p178
        $region70: #{tpu_custom_call.1} parent=67 // pred_check_branch
          %917 = sbr.rel (%p915) target = $region72
        $region71: #{tpu_custom_call.1} parent=67 // pred_region
          %s918 = sand.u32 %s163, 1
          %s919 = scalar_lea.sflag [#allocation6], %s918
          %s920 = sand.u32 %s163, 1
          %s921 = smul.addr %s920, 8
          %s922 = scalar_lea.vmem [#allocation12], %s921
          %924 = dma.done %s919, 128
        $region72: #{tpu_custom_call.1} parent=67 // pred_fallthru
          _
      $region68: #{tpu_custom_call.1} parent=5 // pred_fallthru
        _
    $region6: #{tpu_custom_call.1} parent=1 // loop_footer
      %s22 = sadd.s32 1, %s18
    $region7: #{tpu_custom_call.1} parent=1 // loop_footer_branch
      %17 = sbr.rel target = $region3
    $region8: #{tpu_custom_call.1} parent=1 // loop_exit
      _
    %925 = vsyncpa [#allocation5], 1
    %s926 = scalar_lea.sflag [#allocation5], 1
    %927 = vsyncpa %s926, 1
    %928 = vsyncpa [#allocation8], 1
    %929 = vsyncpa [#allocation11], 1
    %930 = vsyncpa [#allocation6], 1
    %s931 = scalar_lea.sflag [#allocation6], 1
    %932 = vsyncpa %s931, 1

</llo_original>
